<compile_context>
chip_gen: v5e
topology: v5e:2x2
jax: 0.10.0
libtpu: 0.0.40
codegen_flags: <defaults>
</compile_context>

<pallas_src>
import jax
import jax.numpy as jnp
from jax.experimental import pallas as pl
from jax.experimental.pallas import tpu as pltpu

_LANE = 128   # last dims padded to multiples of this (lane-dense tiles/stores)
_TILE = 512   # target A tile edge; double-buffered bf16 tiles stay far below
              # v7x's 64 MiB VMEM while reaching ~85% of HBM roofline


def _round_up(x, m):
    return ((x + m - 1) // m) * m


def _pad_nodes(n):
    """Padded node count: multiple of 128, and of _TILE once n exceeds it."""
    return _round_up(n, _LANE) if n <= _TILE else _round_up(n, _TILE)


def _node_tile(n_pad):
    return min(_TILE, n_pad)


def _compiler_params(dims, vmem_need_bytes):
    kwargs = dict(dimension_semantics=dims)
    # Raise the scoped-VMEM limit only when the working set actually needs it;
    # cap at 56 MiB so it is always below v7x's 64 MiB physical VMEM
    # (v5e / v6e have 128 MiB and could go higher).
    if vmem_need_bytes > 12 * 1024 * 1024:
        kwargs["vmem_limit_bytes"] = int(
            min(max(2 * vmem_need_bytes, 32 * 1024 * 1024), 56 * 1024 * 1024))
    return pltpu.CompilerParams(**kwargs)


# ---------------------------------------------------------------------------
# Kernels
# ---------------------------------------------------------------------------
def gcn_layer_kernel(a_ref, x_ref, w_ref, b_ref, out_ref, acc_ref):
    """One GCNConv + ReLU row block: relu((A @ X) @ W + b)."""
    k = pl.program_id(1)

    @pl.when(k == 0)
    def _init():
        acc_ref[...] = jnp.zeros_like(acc_ref)

    # Aggregate: (tm, tk) bf16 @ (tk, F) bf16 -> f32 accumulator (MXU).
    acc_ref[...] += jnp.dot(a_ref[...], x_ref[...],
                            preferred_element_type=jnp.float32)

    @pl.when(k == pl.num_programs(1) - 1)
    def _finalize():
        h = jnp.dot(acc_ref[...].astype(jnp.bfloat16), w_ref[...],
                    preferred_element_type=jnp.float32) + b_ref[...]
        out_ref[...] = jnp.maximum(h, 0.0).astype(out_ref.dtype)


def pool_linear_kernel(p_ref, h_ref, wl_ref, bl_ref, out_ref, acc_ref):
    """global_mean_pool (P @ H, tiled over N) then Linear(hidden, 1) on the VPU."""
    k = pl.program_id(0)

    @pl.when(k == 0)
    def _init():
        acc_ref[...] = jnp.zeros_like(acc_ref)

    acc_ref[...] += jnp.dot(p_ref[...], h_ref[...],
                            preferred_element_type=jnp.float32)

    @pl.when(k == pl.num_programs(0) - 1)
    def _finalize():
        pooled = acc_ref[...]                                 # (G, Hp) f32
        # 1-wide Linear as a VPU/XLU reduction -- avoids a 1-lane MXU matmul.
        out_ref[...] = (jnp.sum(pooled * wl_ref[...], axis=-1, keepdims=True)
                        + bl_ref[...])


# ---------------------------------------------------------------------------
# pallas_call wrappers
# ---------------------------------------------------------------------------
def gcn_conv(a_p, x_p, w_p, b_p):
    n_pad, f = x_p.shape
    hp = w_p.shape[1]
    tm = tk = _node_tile(n_pad)
    grid = (n_pad // tm, n_pad // tk)
    vmem_need = (2 * (tm * tk + tk * f + tm * hp) * 2   # double-buffered bf16 streams
                 + f * hp * 2 + hp * 4                  # resident W (bf16) + bias (f32)
                 + tm * f * 4)                          # f32 accumulator scratch
    return pl.pallas_call(
        gcn_layer_kernel,
        out_shape=jax.ShapeDtypeStruct((n_pad, hp), jnp.bfloat16),
        grid_spec=pltpu.PrefetchScalarGridSpec(
            num_scalar_prefetch=0,
            grid=grid,
            in_specs=[
                pl.BlockSpec((tm, tk), lambda i, k: (i, k)),   # A tile (streamed)
                pl.BlockSpec((tk, f), lambda i, k: (k, 0)),    # X rows for this k
                pl.BlockSpec((f, hp), lambda i, k: (0, 0)),    # W (resident)
                pl.BlockSpec((1, hp), lambda i, k: (0, 0)),    # bias (resident)
            ],
            out_specs=pl.BlockSpec((tm, hp), lambda i, k: (i, 0)),
            scratch_shapes=[pltpu.VMEM((tm, f), jnp.float32)],
        ),
        compiler_params=_compiler_params(("parallel", "arbitrary"), vmem_need),
        cost_estimate=pl.CostEstimate(
            flops=2 * n_pad * n_pad * f + 2 * n_pad * f * hp,
            transcendentals=0,
            bytes_accessed=(n_pad * n_pad + n_pad * f + n_pad * hp + f * hp) * 2,
        ),
    )(a_p, x_p, w_p, b_p)


def pool_linear(pool_p, h_p, wl_p, bl_p):
    g, n_pad = pool_p.shape
    hp = h_p.shape[1]
    tk = _node_tile(n_pad)
    grid = (n_pad // tk,)
    return pl.pallas_call(
        pool_linear_kernel,
        out_shape=jax.ShapeDtypeStruct((g, 1), jnp.float32),
        grid_spec=pltpu.PrefetchScalarGridSpec(
            num_scalar_prefetch=0,
            grid=grid,
            in_specs=[
                pl.BlockSpec((g, tk), lambda k: (0, k)),    # mean-pool rows
                pl.BlockSpec((tk, hp), lambda k: (k, 0)),   # node features
                pl.BlockSpec((1, hp), lambda k: (0, 0)),    # linear weight (row)
                pl.BlockSpec((1, 1), lambda k: (0, 0)),     # linear bias
            ],
            out_specs=pl.BlockSpec((g, 1), lambda k: (0, 0)),
            scratch_shapes=[pltpu.VMEM((g, hp), jnp.float32)],
        ),
        compiler_params=_compiler_params(("arbitrary",), 0),
    )(pool_p, h_p, wl_p, bl_p)


@jax.jit
def gcn_forward(x_p, a_p, pool_p, padded_params):
    w1, b1, w2, b2, wl, bl = padded_params
    h = gcn_conv(a_p, x_p, w1, b1)     # GCNConv1 + ReLU
    h = gcn_conv(a_p, h, w2, b2)       # GCNConv2 + ReLU
    return pool_linear(pool_p, h, wl, bl)


# ---------------------------------------------------------------------------
# Plain-JAX glue: adjacency, pooling matrix, parameters, padding, reference.
# ---------------------------------------------------------------------------
def build_norm_adj(edge_index, num_nodes):
    """Dense D^-1/2 (A + I) D^-1/2 matching PyG GCNConv defaults."""
    src, dst = edge_index[0], edge_index[1]
    loops = jnp.arange(num_nodes, dtype=edge_index.dtype)
    src = jnp.concatenate([src, loops])
    dst = jnp.concatenate([dst, loops])
    a = jnp.zeros((num_nodes, num_nodes), jnp.float32).at[dst, src].add(1.0)
    deg = a.sum(axis=1)
    dinv = jnp.where(deg > 0, 1.0 / jnp.sqrt(deg), 0.0)
    return dinv[:, None] * a * dinv[None, :]


def build_mean_pool(batch, num_graphs):
    onehot = (batch[None, :] == jnp.arange(num_graphs)[:, None]).astype(jnp.float32)
    counts = onehot.sum(axis=1, keepdims=True)
    return onehot / jnp.maximum(counts, 1.0)


def init_params(key, in_dim, hidden_dim):
    k1, k2, k3 = jax.random.split(key, 3)

    def glorot(k, fan_in, fan_out):
        lim = jnp.sqrt(6.0 / (fan_in + fan_out))
        return jax.random.uniform(k, (fan_in, fan_out), jnp.float32, -lim, lim)

    w1 = glorot(k1, in_dim, hidden_dim)
    b1 = jnp.zeros((1, hidden_dim), jnp.float32)
    w2 = glorot(k2, hidden_dim, hidden_dim)
    b2 = jnp.zeros((1, hidden_dim), jnp.float32)
    wl = glorot(k3, hidden_dim, 1)
    bl = jnp.zeros((1, 1), jnp.float32)
    return (w1, b1, w2, b2, wl, bl)


def pad_inputs(x, a_norm, pool):
    """Zero-pad nodes/features to lane-dense, tile-divisible shapes (exact)."""
    n, fin = x.shape
    g = pool.shape[0]
    n_pad = _pad_nodes(n)
    fp = _round_up(fin, _LANE)
    x_p = jnp.zeros((n_pad, fp), jnp.bfloat16).at[:n, :fin].set(
        x.astype(jnp.bfloat16))
    a_p = jnp.zeros((n_pad, n_pad), jnp.bfloat16).at[:n, :n].set(
        a_norm.astype(jnp.bfloat16))
    p_p = jnp.zeros((g, n_pad), jnp.bfloat16).at[:, :n].set(
        pool.astype(jnp.bfloat16))
    return x_p, a_p, p_p


def pad_params(params, in_dim, hidden_dim):
    w1, b1, w2, b2, wl, bl = params
    fp = _round_up(in_dim, _LANE)
    hp = _round_up(hidden_dim, _LANE)
    w1_p = jnp.zeros((fp, hp), jnp.bfloat16).at[:in_dim, :hidden_dim].set(
        w1.astype(jnp.bfloat16))
    b1_p = jnp.zeros((1, hp), jnp.float32).at[:, :hidden_dim].set(b1)
    w2_p = jnp.zeros((hp, hp), jnp.bfloat16).at[:hidden_dim, :hidden_dim].set(
        w2.astype(jnp.bfloat16))
    b2_p = jnp.zeros((1, hp), jnp.float32).at[:, :hidden_dim].set(b2)
    wl_p = jnp.zeros((1, hp), jnp.float32).at[0, :hidden_dim].set(wl[:, 0])
    bl_p = bl.astype(jnp.float32)
    return (w1_p, b1_p, w2_p, b2_p, wl_p, bl_p)


def reference_forward(x, a_norm, pool, params):
    w1, b1, w2, b2, wl, bl = params
    h = jnp.maximum(a_norm @ (x @ w1) + b1, 0.0)
    h = jnp.maximum(a_norm @ (h @ w2) + b2, 0.0)
    return pool @ h @ wl + bl


# ---------------------------------------------------------------------------
if __name__ == "__main__":
    key = jax.random.PRNGKey(0)
    kx, kpos, kw = jax.random.split(key, 3)

    # Small synthetic "QM9-like" batch: 2 graphs x 8 nodes.
    num_nodes = 16
    num_graphs = 2
    num_features = 11          # QM9 node features
    in_dim = num_features + 3  # + 3D positions (torch.cat([data.x, data.pos], dim=1))
    hidden_dim = 64            # GCN default in the spec
    # TODO(synk): at real QM9 scale, pack many molecules into one block-diagonal
    # A (large N per call) so per-call launch/DMA overhead amortizes.

    node_x = jax.random.normal(kx, (num_nodes, num_features), jnp.float32)
    pos = jax.random.normal(kpos, (num_nodes, 3), jnp.float32)
    x = jnp.concatenate([node_x, pos], axis=1)  # (N, in_dim)

    # Deterministic chain edges within each graph (both directions).
    src_list, dst_list = [], []
    per_graph = num_nodes // num_graphs
    for g in range(num_graphs):
        base = g * per_graph
        for i in range(per_graph - 1):
            src_list += [base + i, base + i + 1]
            dst_list += [base + i + 1, base + i]
    edge_index = jnp.array([src_list, dst_list], dtype=jnp.int32)  # (2, E)
    batch = jnp.repeat(jnp.arange(num_graphs, dtype=jnp.int32), per_graph)

    a_norm = build_norm_adj(edge_index, num_nodes)   # (N, N) f32
    pool = build_mean_pool(batch, num_graphs)        # (G, N) f32
    params = init_params(kw, in_dim, hidden_dim)

    x_p, a_p, pool_p = pad_inputs(x, a_norm, pool)
    padded_params = pad_params(params, in_dim, hidden_dim)

    out = gcn_forward(x_p, a_p, pool_p, padded_params)
    out = jax.block_until_ready(out)

    ref = reference_forward(x, a_norm, pool, params)
    assert out.shape == (num_graphs, 1)
    assert jnp.allclose(out, ref, rtol=2e-2, atol=2e-2), (out, ref)

    print("KERNEL_OK")
</pallas_src>

<mosaic_0001>
module attributes {stable_mosaic.version = 11 : i64} {
  func.func @pool_linear_kernel(%arg0: i32, %arg1: memref<2x128xbf16, #tpu.memory_space<vmem>>, %arg2: memref<128x128xbf16, #tpu.memory_space<vmem>>, %arg3: memref<1x128xf32, #tpu.memory_space<vmem>>, %arg4: memref<1x1xf32, #tpu.memory_space<vmem>>, %arg5: memref<2x1xf32, #tpu.memory_space<vmem>>, %arg6: memref<2x128xf32, #tpu.memory_space<vmem>>) attributes {dimension_semantics = [#tpu.dimension_semantics<arbitrary>], iteration_bounds = array<i64: 1>, scalar_prefetch = 0 : i64, scratch_operands = 1 : i64, tpu.core_type = #tpu.core_type<tc>, window_params = [{transform_indices = @transform_0, window_bounds = array<i64: 2, 128>}, {transform_indices = @transform_1, window_bounds = array<i64: 128, 128>}, {pipeline_mode = #tpu.pipeline_mode<synchronous>, transform_indices = @transform_2, window_bounds = array<i64: 1, 128>}, {pipeline_mode = #tpu.pipeline_mode<synchronous>, transform_indices = @transform_3, window_bounds = array<i64: 1, 1>}, {pipeline_mode = #tpu.pipeline_mode<synchronous>, transform_indices = @transform_4, window_bounds = array<i64: 2, 1>}]} {
    %c0_i32 = arith.constant 0 : i32
    %0 = arith.cmpi eq, %arg0, %c0_i32 : i32
    %1 = arith.extui %0 : i1 to i32
    %c0_i32_0 = arith.constant 0 : i32
    %2 = arith.cmpi ne, %1, %c0_i32_0 : i32
    scf.if %2 {
      %cst_10 = arith.constant 0.000000e+00 : f32
      %12 = vector.broadcast %cst_10 : f32 to vector<2x128xf32>
      %c0_11 = arith.constant 0 : index
      %c0_12 = arith.constant 0 : index
      %13 = vector.load %arg6[%c0_11, %c0_12] : memref<2x128xf32, #tpu.memory_space<vmem>>, vector<2x128xf32>
      tpu.vector_store %arg6[%c0_11, %c0_12], %12 {strides = array<i32>} : memref<2x128xf32, #tpu.memory_space<vmem>>, vector<2x128xf32>,
    } else {
    }
    %c0 = arith.constant 0 : index
    %c0_1 = arith.constant 0 : index
    %3 = vector.load %arg6[%c0, %c0_1] : memref<2x128xf32, #tpu.memory_space<vmem>>, vector<2x128xf32>
    %c0_2 = arith.constant 0 : index
    %c0_3 = arith.constant 0 : index
    %4 = vector.load %arg1[%c0_2, %c0_3] : memref<2x128xbf16, #tpu.memory_space<vmem>>, vector<2x128xbf16>
    %c0_4 = arith.constant 0 : index
    %c0_5 = arith.constant 0 : index
    %5 = vector.load %arg2[%c0_4, %c0_5] : memref<128x128xbf16, #tpu.memory_space<vmem>>, vector<128x128xbf16>
    %cst = arith.constant dense<0.000000e+00> : vector<2x128xf32>
    %6 = tpu.matmul %4, %5, %cst {dimension_numbers = #tpu.dot_dimension_numbers<[1], [0], [0], [1], [0, 0, 1, 1], [], []>} : vector<2x128xbf16>, vector<128x128xbf16>, vector<2x128xf32> -> vector<2x128xf32>
    %7 = arith.addf %3, %6 : vector<2x128xf32>
    %c0_6 = arith.constant 0 : index
    %c0_7 = arith.constant 0 : index
    %8 = vector.load %arg6[%c0_6, %c0_7] : memref<2x128xf32, #tpu.memory_space<vmem>>, vector<2x128xf32>
    tpu.vector_store %arg6[%c0_6, %c0_7], %7 {strides = array<i32>} : memref<2x128xf32, #tpu.memory_space<vmem>>, vector<2x128xf32>,
    %c0_i32_8 = arith.constant 0 : i32
    %9 = arith.cmpi eq, %arg0, %c0_i32_8 : i32
    %10 = arith.extui %9 : i1 to i32
    %c0_i32_9 = arith.constant 0 : i32
    %11 = arith.cmpi ne, %10, %c0_i32_9 : i32
    scf.if %11 {
      %c0_10 = arith.constant 0 : index
      %c0_11 = arith.constant 0 : index
      %12 = vector.load %arg6[%c0_10, %c0_11] : memref<2x128xf32, #tpu.memory_space<vmem>>, vector<2x128xf32>
      %c0_12 = arith.constant 0 : index
      %c0_13 = arith.constant 0 : index
      %13 = vector.load %arg3[%c0_12, %c0_13] : memref<1x128xf32, #tpu.memory_space<vmem>>, vector<1x128xf32>
      %14 = vector.broadcast %13 : vector<1x128xf32> to vector<2x128xf32>
      %15 = arith.mulf %12, %14 : vector<2x128xf32>
      %cst_14 = arith.constant dense<0.000000e+00> : vector<2xf32>
      %16 = vector.multi_reduction <add>, %15, %cst_14 [1] : vector<2x128xf32> to vector<2xf32>
      %17 = vector.shape_cast %16 : vector<2xf32> to vector<2x1xf32>
      %c0_15 = arith.constant 0 : index
      %c0_16 = arith.constant 0 : index
      %18 = vector.load %arg4[%c0_15, %c0_16] : memref<1x1xf32, #tpu.memory_space<vmem>>, vector<1x1xf32>
      %19 = vector.broadcast %18 : vector<1x1xf32> to vector<2x1xf32>
      %20 = arith.addf %17, %19 : vector<2x1xf32>
      %c0_17 = arith.constant 0 : index
      %c0_18 = arith.constant 0 : index
      %21 = vector.load %arg5[%c0_17, %c0_18] : memref<2x1xf32, #tpu.memory_space<vmem>>, vector<2x1xf32>
      tpu.vector_store %arg5[%c0_17, %c0_18], %20 {strides = array<i32>} : memref<2x1xf32, #tpu.memory_space<vmem>>, vector<2x1xf32>,
    } else {
    }
    return
  }
  func.func @transform_0(%arg0: i32) -> (i32, i32) {
    %c0_i32 = arith.constant 0 : i32
    %c0_i32_0 = arith.constant 0 : i32
    return %c0_i32, %arg0 : i32, i32
  }
  func.func @transform_1(%arg0: i32) -> (i32, i32) {
    %c0_i32 = arith.constant 0 : i32
    %c0_i32_0 = arith.constant 0 : i32
    return %arg0, %c0_i32 : i32, i32
  }
  func.func @transform_2(%arg0: i32) -> (i32, i32) {
    %c0_i32 = arith.constant 0 : i32
    %c0_i32_0 = arith.constant 0 : i32
    %c0_i32_1 = arith.constant 0 : i32
    return %c0_i32, %c0_i32_0 : i32, i32
  }
  func.func @transform_3(%arg0: i32) -> (i32, i32) {
    %c0_i32 = arith.constant 0 : i32
    %c0_i32_0 = arith.constant 0 : i32
    %c0_i32_1 = arith.constant 0 : i32
    return %c0_i32, %c0_i32_0 : i32, i32
  }
  func.func @transform_4(%arg0: i32) -> (i32, i32) {
    %c0_i32 = arith.constant 0 : i32
    %c0_i32_0 = arith.constant 0 : i32
    %c0_i32_1 = arith.constant 0 : i32
    return %c0_i32, %c0_i32_0 : i32, i32
  }
}

module attributes {stable_mosaic.version = 11 : i64} {
  func.func @gcn_layer_kernel(%arg0: i32, %arg1: i32, %arg2: memref<128x128xbf16, #tpu.memory_space<vmem>>, %arg3: memref<128x128xbf16, #tpu.memory_space<vmem>>, %arg4: memref<128x128xbf16, #tpu.memory_space<vmem>>, %arg5: memref<1x128xf32, #tpu.memory_space<vmem>>, %arg6: memref<128x128xbf16, #tpu.memory_space<vmem>>, %arg7: memref<128x128xf32, #tpu.memory_space<vmem>>) attributes {dimension_semantics = [#tpu.dimension_semantics<parallel>, #tpu.dimension_semantics<arbitrary>], iteration_bounds = array<i64: 1, 1>, scalar_prefetch = 0 : i64, scratch_operands = 1 : i64, tpu.core_type = #tpu.core_type<tc>, window_params = [{transform_indices = @transform_0, window_bounds = array<i64: 128, 128>}, {transform_indices = @transform_1, window_bounds = array<i64: 128, 128>}, {pipeline_mode = #tpu.pipeline_mode<synchronous>, transform_indices = @transform_2, window_bounds = array<i64: 128, 128>}, {pipeline_mode = #tpu.pipeline_mode<synchronous>, transform_indices = @transform_3, window_bounds = array<i64: 1, 128>}, {transform_indices = @transform_4, window_bounds = array<i64: 128, 128>}]} {
    %c0_i32 = arith.constant 0 : i32
    %0 = arith.cmpi eq, %arg1, %c0_i32 : i32
    %1 = arith.extui %0 : i1 to i32
    %c0_i32_0 = arith.constant 0 : i32
    %2 = arith.cmpi ne, %1, %c0_i32_0 : i32
    scf.if %2 {
      %cst_10 = arith.constant 0.000000e+00 : f32
      %12 = vector.broadcast %cst_10 : f32 to vector<128x128xf32>
      %c0_11 = arith.constant 0 : index
      %c0_12 = arith.constant 0 : index
      %13 = vector.load %arg7[%c0_11, %c0_12] : memref<128x128xf32, #tpu.memory_space<vmem>>, vector<128x128xf32>
      tpu.vector_store %arg7[%c0_11, %c0_12], %12 {strides = array<i32>} : memref<128x128xf32, #tpu.memory_space<vmem>>, vector<128x128xf32>,
    } else {
    }
    %c0 = arith.constant 0 : index
    %c0_1 = arith.constant 0 : index
    %3 = vector.load %arg7[%c0, %c0_1] : memref<128x128xf32, #tpu.memory_space<vmem>>, vector<128x128xf32>
    %c0_2 = arith.constant 0 : index
    %c0_3 = arith.constant 0 : index
    %4 = vector.load %arg2[%c0_2, %c0_3] : memref<128x128xbf16, #tpu.memory_space<vmem>>, vector<128x128xbf16>
    %c0_4 = arith.constant 0 : index
    %c0_5 = arith.constant 0 : index
    %5 = vector.load %arg3[%c0_4, %c0_5] : memref<128x128xbf16, #tpu.memory_space<vmem>>, vector<128x128xbf16>
    %cst = arith.constant dense<0.000000e+00> : vector<128x128xf32>
    %6 = tpu.matmul %4, %5, %cst {dimension_numbers = #tpu.dot_dimension_numbers<[1], [0], [0], [1], [0, 0, 1, 1], [], []>} : vector<128x128xbf16>, vector<128x128xbf16>, vector<128x128xf32> -> vector<128x128xf32>
    %7 = arith.addf %3, %6 : vector<128x128xf32>
    %c0_6 = arith.constant 0 : index
    %c0_7 = arith.constant 0 : index
    %8 = vector.load %arg7[%c0_6, %c0_7] : memref<128x128xf32, #tpu.memory_space<vmem>>, vector<128x128xf32>
    tpu.vector_store %arg7[%c0_6, %c0_7], %7 {strides = array<i32>} : memref<128x128xf32, #tpu.memory_space<vmem>>, vector<128x128xf32>,
    %c0_i32_8 = arith.constant 0 : i32
    %9 = arith.cmpi eq, %arg1, %c0_i32_8 : i32
    %10 = arith.extui %9 : i1 to i32
    %c0_i32_9 = arith.constant 0 : i32
    %11 = arith.cmpi ne, %10, %c0_i32_9 : i32
    scf.if %11 {
      %c0_10 = arith.constant 0 : index
      %c0_11 = arith.constant 0 : index
      %12 = vector.load %arg7[%c0_10, %c0_11] : memref<128x128xf32, #tpu.memory_space<vmem>>, vector<128x128xf32>
      %13 = arith.truncf %12 : vector<128x128xf32> to vector<128x128xbf16>
      %c0_12 = arith.constant 0 : index
      %c0_13 = arith.constant 0 : index
      %14 = vector.load %arg4[%c0_12, %c0_13] : memref<128x128xbf16, #tpu.memory_space<vmem>>, vector<128x128xbf16>
      %cst_14 = arith.constant dense<0.000000e+00> : vector<128x128xf32>
      %15 = tpu.matmul %13, %14, %cst_14 {dimension_numbers = #tpu.dot_dimension_numbers<[1], [0], [0], [1], [0, 0, 1, 1], [], []>} : vector<128x128xbf16>, vector<128x128xbf16>, vector<128x128xf32> -> vector<128x128xf32>
      %c0_15 = arith.constant 0 : index
      %c0_16 = arith.constant 0 : index
      %16 = vector.load %arg5[%c0_15, %c0_16] : memref<1x128xf32, #tpu.memory_space<vmem>>, vector<1x128xf32>
      %17 = vector.broadcast %16 : vector<1x128xf32> to vector<128x128xf32>
      %18 = arith.addf %15, %17 : vector<128x128xf32>
      %cst_17 = arith.constant 0.000000e+00 : f32
      %19 = vector.broadcast %cst_17 : f32 to vector<128x128xf32>
      %20 = arith.maximumf %18, %19 : vector<128x128xf32>
      %21 = arith.truncf %20 : vector<128x128xf32> to vector<128x128xbf16>
      %c0_18 = arith.constant 0 : index
      %c0_19 = arith.constant 0 : index
      %22 = vector.load %arg6[%c0_18, %c0_19] : memref<128x128xbf16, #tpu.memory_space<vmem>>, vector<128x128xbf16>
      tpu.vector_store %arg6[%c0_18, %c0_19], %21 {strides = array<i32>} : memref<128x128xbf16, #tpu.memory_space<vmem>>, vector<128x128xbf16>,
    } else {
    }
    return
  }
  func.func @transform_0(%arg0: i32, %arg1: i32) -> (i32, i32) {
    %c0_i32 = arith.constant 0 : i32
    return %arg0, %arg1 : i32, i32
  }
  func.func @transform_1(%arg0: i32, %arg1: i32) -> (i32, i32) {
    %c0_i32 = arith.constant 0 : i32
    %c0_i32_0 = arith.constant 0 : i32
    return %arg1, %c0_i32 : i32, i32
  }
  func.func @transform_2(%arg0: i32, %arg1: i32) -> (i32, i32) {
    %c0_i32 = arith.constant 0 : i32
    %c0_i32_0 = arith.constant 0 : i32
    %c0_i32_1 = arith.constant 0 : i32
    return %c0_i32, %c0_i32_0 : i32, i32
  }
  func.func @transform_3(%arg0: i32, %arg1: i32) -> (i32, i32) {
    %c0_i32 = arith.constant 0 : i32
    %c0_i32_0 = arith.constant 0 : i32
    %c0_i32_1 = arith.constant 0 : i32
    return %c0_i32, %c0_i32_0 : i32, i32
  }
  func.func @transform_4(%arg0: i32, %arg1: i32) -> (i32, i32) {
    %c0_i32 = arith.constant 0 : i32
    %c0_i32_0 = arith.constant 0 : i32
    return %arg0, %c0_i32 : i32, i32
  }
}

module attributes {stable_mosaic.version = 11 : i64} {
  func.func @gcn_layer_kernel(%arg0: i32, %arg1: i32, %arg2: memref<128x128xbf16, #tpu.memory_space<vmem>>, %arg3: memref<128x128xbf16, #tpu.memory_space<vmem>>, %arg4: memref<128x128xbf16, #tpu.memory_space<vmem>>, %arg5: memref<1x128xf32, #tpu.memory_space<vmem>>, %arg6: memref<128x128xbf16, #tpu.memory_space<vmem>>, %arg7: memref<128x128xf32, #tpu.memory_space<vmem>>) attributes {dimension_semantics = [#tpu.dimension_semantics<parallel>, #tpu.dimension_semantics<arbitrary>], iteration_bounds = array<i64: 1, 1>, scalar_prefetch = 0 : i64, scratch_operands = 1 : i64, tpu.core_type = #tpu.core_type<tc>, window_params = [{transform_indices = @transform_0, window_bounds = array<i64: 128, 128>}, {transform_indices = @transform_1, window_bounds = array<i64: 128, 128>}, {pipeline_mode = #tpu.pipeline_mode<synchronous>, transform_indices = @transform_2, window_bounds = array<i64: 128, 128>}, {pipeline_mode = #tpu.pipeline_mode<synchronous>, transform_indices = @transform_3, window_bounds = array<i64: 1, 128>}, {transform_indices = @transform_4, window_bounds = array<i64: 128, 128>}]} {
    %c0_i32 = arith.constant 0 : i32
    %0 = arith.cmpi eq, %arg1, %c0_i32 : i32
    %1 = arith.extui %0 : i1 to i32
    %c0_i32_0 = arith.constant 0 : i32
    %2 = arith.cmpi ne, %1, %c0_i32_0 : i32
    scf.if %2 {
      %cst_10 = arith.constant 0.000000e+00 : f32
      %12 = vector.broadcast %cst_10 : f32 to vector<128x128xf32>
      %c0_11 = arith.constant 0 : index
      %c0_12 = arith.constant 0 : index
      %13 = vector.load %arg7[%c0_11, %c0_12] : memref<128x128xf32, #tpu.memory_space<vmem>>, vector<128x128xf32>
      tpu.vector_store %arg7[%c0_11, %c0_12], %12 {strides = array<i32>} : memref<128x128xf32, #tpu.memory_space<vmem>>, vector<128x128xf32>,
    } else {
    }
    %c0 = arith.constant 0 : index
    %c0_1 = arith.constant 0 : index
    %3 = vector.load %arg7[%c0, %c0_1] : memref<128x128xf32, #tpu.memory_space<vmem>>, vector<128x128xf32>
    %c0_2 = arith.constant 0 : index
    %c0_3 = arith.constant 0 : index
    %4 = vector.load %arg2[%c0_2, %c0_3] : memref<128x128xbf16, #tpu.memory_space<vmem>>, vector<128x128xbf16>
    %c0_4 = arith.constant 0 : index
    %c0_5 = arith.constant 0 : index
    %5 = vector.load %arg3[%c0_4, %c0_5] : memref<128x128xbf16, #tpu.memory_space<vmem>>, vector<128x128xbf16>
    %cst = arith.constant dense<0.000000e+00> : vector<128x128xf32>
    %6 = tpu.matmul %4, %5, %cst {dimension_numbers = #tpu.dot_dimension_numbers<[1], [0], [0], [1], [0, 0, 1, 1], [], []>} : vector<128x128xbf16>, vector<128x128xbf16>, vector<128x128xf32> -> vector<128x128xf32>
    %7 = arith.addf %3, %6 : vector<128x128xf32>
    %c0_6 = arith.constant 0 : index
    %c0_7 = arith.constant 0 : index
    %8 = vector.load %arg7[%c0_6, %c0_7] : memref<128x128xf32, #tpu.memory_space<vmem>>, vector<128x128xf32>
    tpu.vector_store %arg7[%c0_6, %c0_7], %7 {strides = array<i32>} : memref<128x128xf32, #tpu.memory_space<vmem>>, vector<128x128xf32>,
    %c0_i32_8 = arith.constant 0 : i32
    %9 = arith.cmpi eq, %arg1, %c0_i32_8 : i32
    %10 = arith.extui %9 : i1 to i32
    %c0_i32_9 = arith.constant 0 : i32
    %11 = arith.cmpi ne, %10, %c0_i32_9 : i32
    scf.if %11 {
      %c0_10 = arith.constant 0 : index
      %c0_11 = arith.constant 0 : index
      %12 = vector.load %arg7[%c0_10, %c0_11] : memref<128x128xf32, #tpu.memory_space<vmem>>, vector<128x128xf32>
      %13 = arith.truncf %12 : vector<128x128xf32> to vector<128x128xbf16>
      %c0_12 = arith.constant 0 : index
      %c0_13 = arith.constant 0 : index
      %14 = vector.load %arg4[%c0_12, %c0_13] : memref<128x128xbf16, #tpu.memory_space<vmem>>, vector<128x128xbf16>
      %cst_14 = arith.constant dense<0.000000e+00> : vector<128x128xf32>
      %15 = tpu.matmul %13, %14, %cst_14 {dimension_numbers = #tpu.dot_dimension_numbers<[1], [0], [0], [1], [0, 0, 1, 1], [], []>} : vector<128x128xbf16>, vector<128x128xbf16>, vector<128x128xf32> -> vector<128x128xf32>
      %c0_15 = arith.constant 0 : index
      %c0_16 = arith.constant 0 : index
      %16 = vector.load %arg5[%c0_15, %c0_16] : memref<1x128xf32, #tpu.memory_space<vmem>>, vector<1x128xf32>
      %17 = vector.broadcast %16 : vector<1x128xf32> to vector<128x128xf32>
      %18 = arith.addf %15, %17 : vector<128x128xf32>
      %cst_17 = arith.constant 0.000000e+00 : f32
      %19 = vector.broadcast %cst_17 : f32 to vector<128x128xf32>
      %20 = arith.maximumf %18, %19 : vector<128x128xf32>
      %21 = arith.truncf %20 : vector<128x128xf32> to vector<128x128xbf16>
      %c0_18 = arith.constant 0 : index
      %c0_19 = arith.constant 0 : index
      %22 = vector.load %arg6[%c0_18, %c0_19] : memref<128x128xbf16, #tpu.memory_space<vmem>>, vector<128x128xbf16>
      tpu.vector_store %arg6[%c0_18, %c0_19], %21 {strides = array<i32>} : memref<128x128xbf16, #tpu.memory_space<vmem>>, vector<128x128xbf16>,
    } else {
    }
    return
  }
  func.func @transform_0(%arg0: i32, %arg1: i32) -> (i32, i32) {
    %c0_i32 = arith.constant 0 : i32
    return %arg0, %arg1 : i32, i32
  }
  func.func @transform_1(%arg0: i32, %arg1: i32) -> (i32, i32) {
    %c0_i32 = arith.constant 0 : i32
    %c0_i32_0 = arith.constant 0 : i32
    return %arg1, %c0_i32 : i32, i32
  }
  func.func @transform_2(%arg0: i32, %arg1: i32) -> (i32, i32) {
    %c0_i32 = arith.constant 0 : i32
    %c0_i32_0 = arith.constant 0 : i32
    %c0_i32_1 = arith.constant 0 : i32
    return %c0_i32, %c0_i32_0 : i32, i32
  }
  func.func @transform_3(%arg0: i32, %arg1: i32) -> (i32, i32) {
    %c0_i32 = arith.constant 0 : i32
    %c0_i32_0 = arith.constant 0 : i32
    %c0_i32_1 = arith.constant 0 : i32
    return %c0_i32, %c0_i32_0 : i32, i32
  }
  func.func @transform_4(%arg0: i32, %arg1: i32) -> (i32, i32) {
    %c0_i32 = arith.constant 0 : i32
    %c0_i32_0 = arith.constant 0 : i32
    return %arg0, %c0_i32 : i32, i32
  }
}

</mosaic_0001>

<llo_original>
// kernel: gcn_forward.5
$region0: #{gcn_forward.5}
  #allocation0 [shape = 'u32[]', space=smem, size = 0x4, offset = 0x4, fixed_abs, tag = 'smem constant byte address 0x4 - core index']
  #allocation1 [shape = 'u32[72,128]{1,0:T(1,128)}', space=vmem, size = 0x9000, scoped, tag = 'internal scratch']
  #allocation2 [shape = 'f32[2,128]{1,0:T(2,128)}', space=vmem, size = 0x400, scoped, tag = 'scratch operand']
  #allocation3 [shape = 'f32[1,1]{1,0:T(1,128)S(1)}', space=vmem, size = 0x200, scoped, tag = 'scoped memory for gcn_forward.5']
  %s0 = inlined_call_operand.vmem [shape: bf16[2,128], index: 0, kind: input, shape index: {}]
  %s1 = inlined_call_operand.vmem [shape: bf16[128,128], index: 1, kind: input, shape index: {}]
  %s2 = inlined_call_operand.vmem [shape: f32[1,128], index: 2, kind: input, shape index: {}]
  %s3 = inlined_call_operand.<no memory space> [shape: f32[1,1], index: 3, kind: input, shape index: {}]
  %s4 = inlined_call_operand.vmem [shape: f32[2,1], index: 4, kind: output, shape index: {}]
  %s5 = sld [smem:[#allocation0]]
  $region34: #{gcn_forward.5} parent=0
    _
  %s7 = ssub.s32 1, %s5
  %s8 = scalar_select 0, %s7, %s5
  %v9 = vstv %s3
  %10 = vst [vmem:[#allocation3] sm:$0x1] %v9
  // Predicated region
  $region2: #{gcn_forward.5} parent=0 // pred_check
    _
  $region3: #{gcn_forward.5} parent=0 // pred_check_branch
    %12 = sbr.rel (0) target = $region5
  $region4: #{gcn_forward.5} parent=0 // pred_region
    _
  $region5: #{gcn_forward.5} parent=0 // pred_fallthru
    _
  // Predicated region
  $region6: #{gcn_forward.5} parent=0 // pred_check
    _
  $region7: #{gcn_forward.5} parent=0 // pred_check_branch
    %14 = sbr.rel (0) target = $region9
  $region8: #{gcn_forward.5} parent=0 // pred_region
    _
  $region9: #{gcn_forward.5} parent=0 // pred_fallthru
    _
  // Predicated region
  $region10: #{gcn_forward.5} parent=0 // pred_check
    _
  $region11: #{gcn_forward.5} parent=0 // pred_check_branch
    %16 = sbr.rel (0) target = $region13
  $region12: #{gcn_forward.5} parent=0 // pred_region
    _
  $region13: #{gcn_forward.5} parent=0 // pred_fallthru
    _
  // Predicated region
  $region14: #{gcn_forward.5} parent=0 // pred_check
    _
  $region15: #{gcn_forward.5} parent=0 // pred_check_branch
    %18 = sbr.rel (0) target = $region17
  $region16: #{gcn_forward.5} parent=0 // pred_region
    _
  $region17: #{gcn_forward.5} parent=0 // pred_fallthru
    _
  %p19 = scmp.eq.s32.totalorder 0, 0
  // Predicated region
  $region18: #{gcn_forward.5} parent=0 // pred_check
    %p20 = pneg %p19
  $region19: #{gcn_forward.5} parent=0 // pred_check_branch
    %22 = sbr.rel (%p20) target = $region21
  $region20: #{gcn_forward.5} parent=0 // pred_region
    %23 = vst [vmem:[#allocation2] sm:$0x3] 0.0
  $region21: #{gcn_forward.5} parent=0 // pred_fallthru
    _
  %v24 = vld [vmem:[#allocation2] sm:$0x3]
  %v25 = vld [vmem:[%s0] sm:$0x1]
  %v26 = vld [vmem:[%s1] sm:$0xf]
  %v27 = vld [vmem:[%s1 + $0x4] sm:$0xf]
  %v28 = vld [vmem:[%s1 + $0x8] sm:$0xf]
  %v29 = vld [vmem:[%s1 + $0xc] sm:$0xf]
  %v30 = vld [vmem:[%s1 + $0x10] sm:$0xf]
  %v31 = vld [vmem:[%s1 + $0x14] sm:$0xf]
  %v32 = vld [vmem:[%s1 + $0x18] sm:$0xf]
  %v33 = vld [vmem:[%s1 + $0x1c] sm:$0xf]
  %v34 = vld [vmem:[%s1 + $0x20] sm:$0xf]
  %v35 = vld [vmem:[%s1 + $0x24] sm:$0xf]
  %v36 = vld [vmem:[%s1 + $0x28] sm:$0xf]
  %v37 = vld [vmem:[%s1 + $0x2c] sm:$0xf]
  %v38 = vld [vmem:[%s1 + $0x30] sm:$0xf]
  %v39 = vld [vmem:[%s1 + $0x34] sm:$0xf]
  %v40 = vld [vmem:[%s1 + $0x38] sm:$0xf]
  %v41 = vld [vmem:[%s1 + $0x3c] sm:$0xf]
  %v58 = vunpack.c.l.b16 %v26
  %v59 = vunpack.c.l.b16 %v27
  %v60 = vunpack.c.l.b16 %v28
  %v61 = vunpack.c.l.b16 %v29
  %v62 = vunpack.c.l.b16 %v30
  %v63 = vunpack.c.l.b16 %v31
  %v64 = vunpack.c.l.b16 %v32
  %v65 = vunpack.c.l.b16 %v33
  %v66 = vunpack.c.l.b16 %v34
  %v67 = vunpack.c.l.b16 %v35
  %v68 = vunpack.c.l.b16 %v36
  %v69 = vunpack.c.l.b16 %v37
  %v70 = vunpack.c.l.b16 %v38
  %v71 = vunpack.c.l.b16 %v39
  %v72 = vunpack.c.l.b16 %v40
  %v73 = vunpack.c.l.b16 %v41
  %v74 = vpack.c.b16 %v59, %v58
  %v75 = vpack.c.b16 %v61, %v60
  %v76 = vpack.c.b16 %v63, %v62
  %v77 = vpack.c.b16 %v65, %v64
  %v78 = vpack.c.b16 %v67, %v66
  %v79 = vpack.c.b16 %v69, %v68
  %v80 = vpack.c.b16 %v71, %v70
  %v81 = vpack.c.b16 %v73, %v72
  %90 = vmatpush.bf16.msra.mxu0 %v81
  %91 = vmatpush.bf16.msra.mxu0 %v80
  %92 = vmatpush.bf16.msra.mxu0 %v79
  %93 = vmatpush.bf16.msra.mxu0 %v78
  %94 = vmatpush.bf16.msra.mxu0 %v77
  %95 = vmatpush.bf16.msra.mxu0 %v76
  %96 = vmatpush.bf16.msra.mxu0 %v75
  %97 = vmatpush.bf16.msra.mxu0 %v74
  %98 = vmatmul.bf16.gmra.mxu0 %v25
  %v99 = vpop.f32.mrf.mxu0
  %v100 = vadd.f32 0.0, %v99
  %v101 = vpop.f32.mrf.mxu0
  %102 = vdwg.mxu0
  %v103 = vadd.f32 %v24, %v100
  %104 = vst [vmem:[#allocation2] sm:$0x3] %v103
  // Predicated region
  $region22: #{gcn_forward.5} parent=0 // pred_check
    %p105 = pneg %p19
  $region23: #{gcn_forward.5} parent=0 // pred_check_branch
    %107 = sbr.rel (%p105) target = $region25
  $region24: #{gcn_forward.5} parent=0 // pred_region
    %v108 = vld [vmem:[#allocation2] sm:$0x3]
    %v109 = vld [vmem:[%s2] sm:$0x1]
    %v111 = vperm.slane %v109, 0
    %v113 = vmul.f32 %v108, %v111
    %vm114 = vcmask 1041408
    %v115 = vsel %vm114, %v113, 0.0
    %116 = vadd.xlane.f32.xlu0 %v115
    %v117 = vpop.xlane.xlu0 %116
    %v118 = vld [vmem:[#allocation3] sm:$0x1]
    %v120 = vperm.slane %v118, 0
    %v122 = vadd.f32 %v117, %v120
    %vm123 = vcmask 1024
    %124 = vst.msk [vmem:[%s4] sm:$0x3] %vm123, %v122
  $region25: #{gcn_forward.5} parent=0 // pred_fallthru
    _
  // Predicated region
  $region26: #{gcn_forward.5} parent=0 // pred_check
    _
  $region27: #{gcn_forward.5} parent=0 // pred_check_branch
    %126 = sbr.rel (0) target = $region29
  $region28: #{gcn_forward.5} parent=0 // pred_region
    _
  $region29: #{gcn_forward.5} parent=0 // pred_fallthru
    _
  // Predicated region
  $region30: #{gcn_forward.5} parent=0 // pred_check
    _
  $region31: #{gcn_forward.5} parent=0 // pred_check_branch
    %128 = sbr.rel (0) target = $region33
  $region32: #{gcn_forward.5} parent=0 // pred_region
    _
  $region33: #{gcn_forward.5} parent=0 // pred_fallthru
    _

// kernel: gcn_forward.3
$region0: #{gcn_forward.3}
  #allocation0 [shape = 'u32[]', space=smem, size = 0x4, offset = 0x4, fixed_abs, tag = 'smem constant byte address 0x4 - core index']
  #allocation1 [shape = 'u32[72,128]{1,0:T(1,128)}', space=vmem, size = 0x9000, scoped, tag = 'internal scratch']
  #allocation2 [shape = 'f32[128,128]{1,0:T(8,128)}', space=vmem, size = 0x10000, scoped, tag = 'scratch operand']
  %s0 = inlined_call_operand.hbm [shape: bf16[128,128], index: 0, kind: input, shape index: {}]
  %s1 = inlined_call_operand.hbm [shape: bf16[128,128], index: 1, kind: input, shape index: {}]
  %s2 = inlined_call_operand.hbm [shape: bf16[128,128], index: 2, kind: input, shape index: {}]
  %s3 = inlined_call_operand.vmem [shape: f32[1,128], index: 3, kind: input, shape index: {}]
  %s4 = inlined_call_operand.vmem [shape: bf16[128,128], index: 4, kind: output, shape index: {}]
  %s5 = sld [smem:[#allocation0]]
  $region46: #{gcn_forward.3} parent=0
    _
  %s7 = ssub.s32 1, %s5
  %s8 = scalar_select 0, %s7, %s5
  $region1: #{gcn_forward.3} parent=0
    #allocation3 [shape = 'u8[32768]{0}', space=vmem, size = 0x8000, scoped, tag = 'input window, operand 0, single buffered']
    #allocation4 [shape = 's32[1]{0}', space=sflag, size = 0x4, scoped, tag = 'scoped memory for gcn_forward.3']
    #allocation5 [shape = 'u8[32768]{0}', space=vmem, size = 0x8000, scoped, tag = 'input window, operand 1, single buffered']
    #allocation6 [shape = 's32[1]{0}', space=sflag, size = 0x4, scoped, tag = 'scoped memory for gcn_forward.3']
    #allocation7 [shape = 'u8[32768]{0}', space=vmem, size = 0x8000, scoped, tag = 'input window, operand 2, single buffered']
    %9 = vsyncpa [#allocation4], 0
    %10 = vsyncpa [#allocation6], 0
    // Predicated region
    $region2: #{gcn_forward.3} parent=1 // pred_check
      _
    $region3: #{gcn_forward.3} parent=1 // pred_check_branch
      %12 = sbr.rel (0) target = $region5
    $region4: #{gcn_forward.3} parent=1 // pred_region
      %14 = vsyncadd [#allocation4], 0
      %s15 = sshll.u32 %s0, 4
      %s16 = int_to_ptr.hbm [resolvable:$true] %s15
      %s17 = sshll.u32 [#allocation3], 4
      %s18 = int_to_ptr.vmem [resolvable:$true] %s17
      %23 = dma.hbm_to_vmem [thread:$0]  %s16, 1024, %s18, [#allocation4], 64, 64, 4
    $region5: #{gcn_forward.3} parent=1 // pred_fallthru
      _
    // Predicated region
    $region6: #{gcn_forward.3} parent=1 // pred_check
      _
    $region7: #{gcn_forward.3} parent=1 // pred_check_branch
      %25 = sbr.rel (0) target = $region9
    $region8: #{gcn_forward.3} parent=1 // pred_region
      %27 = vsyncadd [#allocation6], 0
      %s28 = sshll.u32 %s1, 4
      %s29 = int_to_ptr.hbm [resolvable:$true] %s28
      %s30 = sshll.u32 [#allocation5], 4
      %s31 = int_to_ptr.vmem [resolvable:$true] %s30
      %36 = dma.hbm_to_vmem [thread:$0]  %s29, 1024, %s31, [#allocation6], 64, 64, 4
    $region9: #{gcn_forward.3} parent=1 // pred_fallthru
      _
    // Predicated region
    $region10: #{gcn_forward.3} parent=1 // pred_check
      _
    $region11: #{gcn_forward.3} parent=1 // pred_check_branch
      %38 = sbr.rel (0) target = $region13
    $region12: #{gcn_forward.3} parent=1 // pred_region
      %40 = vsyncadd [#allocation6], 0
      %s41 = sshll.u32 %s2, 4
      %s42 = int_to_ptr.hbm [resolvable:$true] %s41
      %s43 = sshll.u32 [#allocation7], 4
      %s44 = int_to_ptr.vmem [resolvable:$true] %s43
      %49 = dma.hbm_to_vmem [thread:$0]  %s42, 1024, %s44, [#allocation6], 64, 64, 4
    $region13: #{gcn_forward.3} parent=1 // pred_fallthru
      _
    // Predicated region
    $region14: #{gcn_forward.3} parent=1 // pred_check
      _
    $region15: #{gcn_forward.3} parent=1 // pred_check_branch
      %51 = sbr.rel (0) target = $region17
    $region16: #{gcn_forward.3} parent=1 // pred_region
      _
    $region17: #{gcn_forward.3} parent=1 // pred_fallthru
      _
    // Predicated region
    $region18: #{gcn_forward.3} parent=1 // pred_check
      _
    $region19: #{gcn_forward.3} parent=1 // pred_check_branch
      %53 = sbr.rel (0) target = $region21
    $region20: #{gcn_forward.3} parent=1 // pred_region
      %55 = dma.done [#allocation4], 1024
    $region21: #{gcn_forward.3} parent=1 // pred_fallthru
      _
    // Predicated region
    $region22: #{gcn_forward.3} parent=1 // pred_check
      _
    $region23: #{gcn_forward.3} parent=1 // pred_check_branch
      %57 = sbr.rel (0) target = $region25
    $region24: #{gcn_forward.3} parent=1 // pred_region
      %59 = dma.done [#allocation6], 1024
    $region25: #{gcn_forward.3} parent=1 // pred_fallthru
      _
    // Predicated region
    $region26: #{gcn_forward.3} parent=1 // pred_check
      _
    $region27: #{gcn_forward.3} parent=1 // pred_check_branch
      %61 = sbr.rel (0) target = $region29
    $region28: #{gcn_forward.3} parent=1 // pred_region
      %63 = dma.done [#allocation6], 1024
    $region29: #{gcn_forward.3} parent=1 // pred_fallthru
      _
    %p64 = scmp.eq.s32.totalorder 0, 0
    // Predicated region
    $region30: #{gcn_forward.3} parent=1 // pred_check
      %p65 = pneg %p64
    $region31: #{gcn_forward.3} parent=1 // pred_check_branch
      %67 = sbr.rel (%p65) target = $region33
    $region32: #{gcn_forward.3} parent=1 // pred_region
      %68 = vst [vmem:[#allocation2] sm:$0xff] 0.0
      %69 = vst [vmem:[#allocation2 + $0x8] sm:$0xff] 0.0
      %70 = vst [vmem:[#allocation2 + $0x10] sm:$0xff] 0.0
      %71 = vst [vmem:[#allocation2 + $0x18] sm:$0xff] 0.0
      %72 = vst [vmem:[#allocation2 + $0x20] sm:$0xff] 0.0
      %73 = vst [vmem:[#allocation2 + $0x28] sm:$0xff] 0.0
      %74 = vst [vmem:[#allocation2 + $0x30] sm:$0xff] 0.0
      %75 = vst [vmem:[#allocation2 + $0x38] sm:$0xff] 0.0
      %76 = vst [vmem:[#allocation2 + $0x40] sm:$0xff] 0.0
      %77 = vst [vmem:[#allocation2 + $0x48] sm:$0xff] 0.0
      %78 = vst [vmem:[#allocation2 + $0x50] sm:$0xff] 0.0
      %79 = vst [vmem:[#allocation2 + $0x58] sm:$0xff] 0.0
      %80 = vst [vmem:[#allocation2 + $0x60] sm:$0xff] 0.0
      %81 = vst [vmem:[#allocation2 + $0x68] sm:$0xff] 0.0
      %82 = vst [vmem:[#allocation2 + $0x70] sm:$0xff] 0.0
      %83 = vst [vmem:[#allocation2 + $0x78] sm:$0xff] 0.0
    $region33: #{gcn_forward.3} parent=1 // pred_fallthru
      _
    %v84 = vld [vmem:[#allocation2] sm:$0xff]
    %v85 = vld [vmem:[#allocation2 + $0x8] sm:$0xff]
    %v86 = vld [vmem:[#allocation2 + $0x10] sm:$0xff]
    %v87 = vld [vmem:[#allocation2 + $0x18] sm:$0xff]
    %v88 = vld [vmem:[#allocation2 + $0x20] sm:$0xff]
    %v89 = vld [vmem:[#allocation2 + $0x28] sm:$0xff]
    %v90 = vld [vmem:[#allocation2 + $0x30] sm:$0xff]
    %v91 = vld [vmem:[#allocation2 + $0x38] sm:$0xff]
    %v92 = vld [vmem:[#allocation2 + $0x40] sm:$0xff]
    %v93 = vld [vmem:[#allocation2 + $0x48] sm:$0xff]
    %v94 = vld [vmem:[#allocation2 + $0x50] sm:$0xff]
    %v95 = vld [vmem:[#allocation2 + $0x58] sm:$0xff]
    %v96 = vld [vmem:[#allocation2 + $0x60] sm:$0xff]
    %v97 = vld [vmem:[#allocation2 + $0x68] sm:$0xff]
    %v98 = vld [vmem:[#allocation2 + $0x70] sm:$0xff]
    %v99 = vld [vmem:[#allocation2 + $0x78] sm:$0xff]
    %v100 = vld [vmem:[#allocation3] sm:$0xf]
    %v101 = vld [vmem:[#allocation3 + $0x4] sm:$0xf]
    %v102 = vld [vmem:[#allocation3 + $0x8] sm:$0xf]
    %v103 = vld [vmem:[#allocation3 + $0xc] sm:$0xf]
    %v104 = vld [vmem:[#allocation3 + $0x10] sm:$0xf]
    %v105 = vld [vmem:[#allocation3 + $0x14] sm:$0xf]
    %v106 = vld [vmem:[#allocation3 + $0x18] sm:$0xf]
    %v107 = vld [vmem:[#allocation3 + $0x1c] sm:$0xf]
    %v108 = vld [vmem:[#allocation3 + $0x20] sm:$0xf]
    %v109 = vld [vmem:[#allocation3 + $0x24] sm:$0xf]
    %v110 = vld [vmem:[#allocation3 + $0x28] sm:$0xf]
    %v111 = vld [vmem:[#allocation3 + $0x2c] sm:$0xf]
    %v112 = vld [vmem:[#allocation3 + $0x30] sm:$0xf]
    %v113 = vld [vmem:[#allocation3 + $0x34] sm:$0xf]
    %v114 = vld [vmem:[#allocation3 + $0x38] sm:$0xf]
    %v115 = vld [vmem:[#allocation3 + $0x3c] sm:$0xf]
    %v116 = vld [vmem:[#allocation5] sm:$0xf]
    %v117 = vld [vmem:[#allocation5 + $0x4] sm:$0xf]
    %v118 = vld [vmem:[#allocation5 + $0x8] sm:$0xf]
    %v119 = vld [vmem:[#allocation5 + $0xc] sm:$0xf]
    %v120 = vld [vmem:[#allocation5 + $0x10] sm:$0xf]
    %v121 = vld [vmem:[#allocation5 + $0x14] sm:$0xf]
    %v122 = vld [vmem:[#allocation5 + $0x18] sm:$0xf]
    %v123 = vld [vmem:[#allocation5 + $0x1c] sm:$0xf]
    %v124 = vld [vmem:[#allocation5 + $0x20] sm:$0xf]
    %v125 = vld [vmem:[#allocation5 + $0x24] sm:$0xf]
    %v126 = vld [vmem:[#allocation5 + $0x28] sm:$0xf]
    %v127 = vld [vmem:[#allocation5 + $0x2c] sm:$0xf]
    %v128 = vld [vmem:[#allocation5 + $0x30] sm:$0xf]
    %v129 = vld [vmem:[#allocation5 + $0x34] sm:$0xf]
    %v130 = vld [vmem:[#allocation5 + $0x38] sm:$0xf]
    %v131 = vld [vmem:[#allocation5 + $0x3c] sm:$0xf]
    %v148 = vunpack.c.l.b16 %v100
    %v149 = vunpack.c.l.b16 %v101
    %v150 = vunpack.c.l.b16 %v102
    %v151 = vunpack.c.l.b16 %v103
    %v152 = vunpack.c.l.b16 %v104
    %v153 = vunpack.c.l.b16 %v105
    %v154 = vunpack.c.l.b16 %v106
    %v155 = vunpack.c.l.b16 %v107
    %v156 = vunpack.c.l.b16 %v108
    %v157 = vunpack.c.l.b16 %v109
    %v158 = vunpack.c.l.b16 %v110
    %v159 = vunpack.c.l.b16 %v111
    %v160 = vunpack.c.l.b16 %v112
    %v161 = vunpack.c.l.b16 %v113
    %v162 = vunpack.c.l.b16 %v114
    %v163 = vunpack.c.l.b16 %v115
    %v164 = vpack.c.b16 %v149, %v148
    %v165 = vpack.c.b16 %v151, %v150
    %v166 = vpack.c.b16 %v153, %v152
    %v167 = vpack.c.b16 %v155, %v154
    %v168 = vpack.c.b16 %v157, %v156
    %v169 = vpack.c.b16 %v159, %v158
    %v170 = vpack.c.b16 %v161, %v160
    %v171 = vpack.c.b16 %v163, %v162
    %v196 = vunpack.c.l.b16 %v116
    %v197 = vunpack.c.l.b16 %v117
    %v198 = vunpack.c.l.b16 %v118
    %v199 = vunpack.c.l.b16 %v119
    %v200 = vunpack.c.l.b16 %v120
    %v201 = vunpack.c.l.b16 %v121
    %v202 = vunpack.c.l.b16 %v122
    %v203 = vunpack.c.l.b16 %v123
    %v204 = vunpack.c.l.b16 %v124
    %v205 = vunpack.c.l.b16 %v125
    %v206 = vunpack.c.l.b16 %v126
    %v207 = vunpack.c.l.b16 %v127
    %v208 = vunpack.c.l.b16 %v128
    %v209 = vunpack.c.l.b16 %v129
    %v210 = vunpack.c.l.b16 %v130
    %v211 = vunpack.c.l.b16 %v131
    %v212 = vpack.c.b16 %v197, %v196
    %v213 = vpack.c.b16 %v199, %v198
    %v214 = vpack.c.b16 %v201, %v200
    %v215 = vpack.c.b16 %v203, %v202
    %v216 = vpack.c.b16 %v205, %v204
    %v217 = vpack.c.b16 %v207, %v206
    %v218 = vpack.c.b16 %v209, %v208
    %v219 = vpack.c.b16 %v211, %v210
    %228 = vmatpush.bf16.msra.mxu0 %v219
    %229 = vmatpush.bf16.msra.mxu0 %v218
    %230 = vmatpush.bf16.msra.mxu0 %v217
    %231 = vmatpush.bf16.msra.mxu0 %v216
    %232 = vmatpush.bf16.msra.mxu0 %v215
    %233 = vmatpush.bf16.msra.mxu0 %v214
    %234 = vmatpush.bf16.msra.mxu0 %v213
    %235 = vmatpush.bf16.msra.mxu0 %v212
    %236 = vmatmul.bf16.gmra.mxu0 %v164
    %v237 = vpop.f32.mrf.mxu0
    %v238 = vadd.f32 0.0, %v237
    %v239 = vpop.f32.mrf.mxu0
    %v240 = vadd.f32 0.0, %v239
    %241 = vmatmul.bf16.gmra.mxu0 %v165
    %v242 = vpop.f32.mrf.mxu0
    %v243 = vadd.f32 0.0, %v242
    %v244 = vpop.f32.mrf.mxu0
    %v245 = vadd.f32 0.0, %v244
    %246 = vmatmul.bf16.gmra.mxu0 %v166
    %v247 = vpop.f32.mrf.mxu0
    %v248 = vadd.f32 0.0, %v247
    %v249 = vpop.f32.mrf.mxu0
    %v250 = vadd.f32 0.0, %v249
    %251 = vmatmul.bf16.gmra.mxu0 %v167
    %v252 = vpop.f32.mrf.mxu0
    %v253 = vadd.f32 0.0, %v252
    %v254 = vpop.f32.mrf.mxu0
    %v255 = vadd.f32 0.0, %v254
    %256 = vmatmul.bf16.gmra.mxu0 %v168
    %v257 = vpop.f32.mrf.mxu0
    %v258 = vadd.f32 0.0, %v257
    %v259 = vpop.f32.mrf.mxu0
    %v260 = vadd.f32 0.0, %v259
    %261 = vmatmul.bf16.gmra.mxu0 %v169
    %v262 = vpop.f32.mrf.mxu0
    %v263 = vadd.f32 0.0, %v262
    %v264 = vpop.f32.mrf.mxu0
    %v265 = vadd.f32 0.0, %v264
    %266 = vmatmul.bf16.gmra.mxu0 %v170
    %v267 = vpop.f32.mrf.mxu0
    %v268 = vadd.f32 0.0, %v267
    %v269 = vpop.f32.mrf.mxu0
    %v270 = vadd.f32 0.0, %v269
    %271 = vmatmul.bf16.gmra.mxu0 %v171
    %v272 = vpop.f32.mrf.mxu0
    %v273 = vadd.f32 0.0, %v272
    %v274 = vpop.f32.mrf.mxu0
    %v275 = vadd.f32 0.0, %v274
    %276 = vdwg.mxu0
    %v277 = vadd.f32 %v84, %v238
    %v278 = vadd.f32 %v85, %v240
    %v279 = vadd.f32 %v86, %v243
    %v280 = vadd.f32 %v87, %v245
    %v281 = vadd.f32 %v88, %v248
    %v282 = vadd.f32 %v89, %v250
    %v283 = vadd.f32 %v90, %v253
    %v284 = vadd.f32 %v91, %v255
    %v285 = vadd.f32 %v92, %v258
    %v286 = vadd.f32 %v93, %v260
    %v287 = vadd.f32 %v94, %v263
    %v288 = vadd.f32 %v95, %v265
    %v289 = vadd.f32 %v96, %v268
    %v290 = vadd.f32 %v97, %v270
    %v291 = vadd.f32 %v98, %v273
    %v292 = vadd.f32 %v99, %v275
    %293 = vst [vmem:[#allocation2] sm:$0xff] %v277
    %294 = vst [vmem:[#allocation2 + $0x8] sm:$0xff] %v278
    %295 = vst [vmem:[#allocation2 + $0x10] sm:$0xff] %v279
    %296 = vst [vmem:[#allocation2 + $0x18] sm:$0xff] %v280
    %297 = vst [vmem:[#allocation2 + $0x20] sm:$0xff] %v281
    %298 = vst [vmem:[#allocation2 + $0x28] sm:$0xff] %v282
    %299 = vst [vmem:[#allocation2 + $0x30] sm:$0xff] %v283
    %300 = vst [vmem:[#allocation2 + $0x38] sm:$0xff] %v284
    %301 = vst [vmem:[#allocation2 + $0x40] sm:$0xff] %v285
    %302 = vst [vmem:[#allocation2 + $0x48] sm:$0xff] %v286
    %303 = vst [vmem:[#allocation2 + $0x50] sm:$0xff] %v287
    %304 = vst [vmem:[#allocation2 + $0x58] sm:$0xff] %v288
    %305 = vst [vmem:[#allocation2 + $0x60] sm:$0xff] %v289
    %306 = vst [vmem:[#allocation2 + $0x68] sm:$0xff] %v290
    %307 = vst [vmem:[#allocation2 + $0x70] sm:$0xff] %v291
    %308 = vst [vmem:[#allocation2 + $0x78] sm:$0xff] %v292
    // Predicated region
    $region34: #{gcn_forward.3} parent=1 // pred_check
      %p309 = pneg %p64
    $region35: #{gcn_forward.3} parent=1 // pred_check_branch
      %311 = sbr.rel (%p309) target = $region37
    $region36: #{gcn_forward.3} parent=1 // pred_region
      %v312 = vld [vmem:[#allocation2] sm:$0xff]
      %v313 = vld [vmem:[#allocation2 + $0x8] sm:$0xff]
      %v314 = vld [vmem:[#allocation2 + $0x10] sm:$0xff]
      %v315 = vld [vmem:[#allocation2 + $0x18] sm:$0xff]
      %v316 = vld [vmem:[#allocation2 + $0x20] sm:$0xff]
      %v317 = vld [vmem:[#allocation2 + $0x28] sm:$0xff]
      %v318 = vld [vmem:[#allocation2 + $0x30] sm:$0xff]
      %v319 = vld [vmem:[#allocation2 + $0x38] sm:$0xff]
      %v320 = vld [vmem:[#allocation2 + $0x40] sm:$0xff]
      %v321 = vld [vmem:[#allocation2 + $0x48] sm:$0xff]
      %v322 = vld [vmem:[#allocation2 + $0x50] sm:$0xff]
      %v323 = vld [vmem:[#allocation2 + $0x58] sm:$0xff]
      %v324 = vld [vmem:[#allocation2 + $0x60] sm:$0xff]
      %v325 = vld [vmem:[#allocation2 + $0x68] sm:$0xff]
      %v326 = vld [vmem:[#allocation2 + $0x70] sm:$0xff]
      %v327 = vld [vmem:[#allocation2 + $0x78] sm:$0xff]
      %v328 = vpack.c.bf16 %v313, %v312
      %v329 = vpack.c.bf16 %v315, %v314
      %v330 = vpack.c.bf16 %v317, %v316
      %v331 = vpack.c.bf16 %v319, %v318
      %v332 = vpack.c.bf16 %v321, %v320
      %v333 = vpack.c.bf16 %v323, %v322
      %v334 = vpack.c.bf16 %v325, %v324
      %v335 = vpack.c.bf16 %v327, %v326
      %v336 = vld [vmem:[#allocation7] sm:$0xf]
      %v337 = vld [vmem:[#allocation7 + $0x4] sm:$0xf]
      %v338 = vld [vmem:[#allocation7 + $0x8] sm:$0xf]
      %v339 = vld [vmem:[#allocation7 + $0xc] sm:$0xf]
      %v340 = vld [vmem:[#allocation7 + $0x10] sm:$0xf]
      %v341 = vld [vmem:[#allocation7 + $0x14] sm:$0xf]
      %v342 = vld [vmem:[#allocation7 + $0x18] sm:$0xf]
      %v343 = vld [vmem:[#allocation7 + $0x1c] sm:$0xf]
      %v344 = vld [vmem:[#allocation7 + $0x20] sm:$0xf]
      %v345 = vld [vmem:[#allocation7 + $0x24] sm:$0xf]
      %v346 = vld [vmem:[#allocation7 + $0x28] sm:$0xf]
      %v347 = vld [vmem:[#allocation7 + $0x2c] sm:$0xf]
      %v348 = vld [vmem:[#allocation7 + $0x30] sm:$0xf]
      %v349 = vld [vmem:[#allocation7 + $0x34] sm:$0xf]
      %v350 = vld [vmem:[#allocation7 + $0x38] sm:$0xf]
      %v351 = vld [vmem:[#allocation7 + $0x3c] sm:$0xf]
      %v352 = vld [vmem:[%s3] sm:$0x1]
      %v354 = vperm.slane %v352, 0
      %v372 = vunpack.c.l.b16 %v336
      %v373 = vunpack.c.l.b16 %v337
      %v374 = vunpack.c.l.b16 %v338
      %v375 = vunpack.c.l.b16 %v339
      %v376 = vunpack.c.l.b16 %v340
      %v377 = vunpack.c.l.b16 %v341
      %v378 = vunpack.c.l.b16 %v342
      %v379 = vunpack.c.l.b16 %v343
      %v380 = vunpack.c.l.b16 %v344
      %v381 = vunpack.c.l.b16 %v345
      %v382 = vunpack.c.l.b16 %v346
      %v383 = vunpack.c.l.b16 %v347
      %v384 = vunpack.c.l.b16 %v348
      %v385 = vunpack.c.l.b16 %v349
      %v386 = vunpack.c.l.b16 %v350
      %v387 = vunpack.c.l.b16 %v351
      %v388 = vpack.c.b16 %v373, %v372
      %v389 = vpack.c.b16 %v375, %v374
      %v390 = vpack.c.b16 %v377, %v376
      %v391 = vpack.c.b16 %v379, %v378
      %v392 = vpack.c.b16 %v381, %v380
      %v393 = vpack.c.b16 %v383, %v382
      %v394 = vpack.c.b16 %v385, %v384
      %v395 = vpack.c.b16 %v387, %v386
      %404 = vmatpush.bf16.msra.mxu0 %v395
      %405 = vmatpush.bf16.msra.mxu0 %v394
      %406 = vmatpush.bf16.msra.mxu0 %v393
      %407 = vmatpush.bf16.msra.mxu0 %v392
      %408 = vmatpush.bf16.msra.mxu0 %v391
      %409 = vmatpush.bf16.msra.mxu0 %v390
      %410 = vmatpush.bf16.msra.mxu0 %v389
      %411 = vmatpush.bf16.msra.mxu0 %v388
      %412 = vmatmul.bf16.gmra.mxu0 %v328
      %v413 = vpop.f32.mrf.mxu0
      %v414 = vadd.f32 %v354, %v413
      %v415 = vpop.f32.mrf.mxu0
      %v416 = vadd.f32 %v354, %v415
      %417 = vmatmul.bf16.gmra.mxu0 %v329
      %v418 = vpop.f32.mrf.mxu0
      %v419 = vadd.f32 %v354, %v418
      %v420 = vpop.f32.mrf.mxu0
      %v421 = vadd.f32 %v354, %v420
      %422 = vmatmul.bf16.gmra.mxu0 %v330
      %v423 = vpop.f32.mrf.mxu0
      %v424 = vadd.f32 %v354, %v423
      %v425 = vpop.f32.mrf.mxu0
      %v426 = vadd.f32 %v354, %v425
      %427 = vmatmul.bf16.gmra.mxu0 %v331
      %v428 = vpop.f32.mrf.mxu0
      %v429 = vadd.f32 %v354, %v428
      %v430 = vpop.f32.mrf.mxu0
      %v431 = vadd.f32 %v354, %v430
      %432 = vmatmul.bf16.gmra.mxu0 %v332
      %v433 = vpop.f32.mrf.mxu0
      %v434 = vadd.f32 %v354, %v433
      %v435 = vpop.f32.mrf.mxu0
      %v436 = vadd.f32 %v354, %v435
      %437 = vmatmul.bf16.gmra.mxu0 %v333
      %v438 = vpop.f32.mrf.mxu0
      %v439 = vadd.f32 %v354, %v438
      %v440 = vpop.f32.mrf.mxu0
      %v441 = vadd.f32 %v354, %v440
      %442 = vmatmul.bf16.gmra.mxu0 %v334
      %v443 = vpop.f32.mrf.mxu0
      %v444 = vadd.f32 %v354, %v443
      %v445 = vpop.f32.mrf.mxu0
      %v446 = vadd.f32 %v354, %v445
      %447 = vmatmul.bf16.gmra.mxu0 %v335
      %v448 = vpop.f32.mrf.mxu0
      %v449 = vadd.f32 %v354, %v448
      %v450 = vpop.f32.mrf.mxu0
      %v451 = vadd.f32 %v354, %v450
      %452 = vdwg.mxu0
      %v453 = vmax.f32 %v414, 0.0
      %v454 = vmax.f32 %v416, 0.0
      %v455 = vmax.f32 %v419, 0.0
      %v456 = vmax.f32 %v421, 0.0
      %v457 = vmax.f32 %v424, 0.0
      %v458 = vmax.f32 %v426, 0.0
      %v459 = vmax.f32 %v429, 0.0
      %v460 = vmax.f32 %v431, 0.0
      %v461 = vmax.f32 %v434, 0.0
      %v462 = vmax.f32 %v436, 0.0
      %v463 = vmax.f32 %v439, 0.0
      %v464 = vmax.f32 %v441, 0.0
      %v465 = vmax.f32 %v444, 0.0
      %v466 = vmax.f32 %v446, 0.0
      %v467 = vmax.f32 %v449, 0.0
      %v468 = vmax.f32 %v451, 0.0
      %v469 = vpack.c.bf16 %v453, %v453
      %v470 = vpack.c.bf16 %v454, %v454
      %v471 = vpack.c.bf16 %v455, %v455
      %v472 = vpack.c.bf16 %v456, %v456
      %v473 = vpack.c.bf16 %v457, %v457
      %v474 = vpack.c.bf16 %v458, %v458
      %v475 = vpack.c.bf16 %v459, %v459
      %v476 = vpack.c.bf16 %v460, %v460
      %v477 = vpack.c.bf16 %v461, %v461
      %v478 = vpack.c.bf16 %v462, %v462
      %v479 = vpack.c.bf16 %v463, %v463
      %v480 = vpack.c.bf16 %v464, %v464
      %v481 = vpack.c.bf16 %v465, %v465
      %v482 = vpack.c.bf16 %v466, %v466
      %v483 = vpack.c.bf16 %v467, %v467
      %v484 = vpack.c.bf16 %v468, %v468
      %485 = vst [vmem:[%s4] sm:$0xf] %v469
      %486 = vst [vmem:[%s4 + $0x4] sm:$0xf] %v470
      %487 = vst [vmem:[%s4 + $0x8] sm:$0xf] %v471
      %488 = vst [vmem:[%s4 + $0xc] sm:$0xf] %v472
      %489 = vst [vmem:[%s4 + $0x10] sm:$0xf] %v473
      %490 = vst [vmem:[%s4 + $0x14] sm:$0xf] %v474
      %491 = vst [vmem:[%s4 + $0x18] sm:$0xf] %v475
      %492 = vst [vmem:[%s4 + $0x1c] sm:$0xf] %v476
      %493 = vst [vmem:[%s4 + $0x20] sm:$0xf] %v477
      %494 = vst [vmem:[%s4 + $0x24] sm:$0xf] %v478
      %495 = vst [vmem:[%s4 + $0x28] sm:$0xf] %v479
      %496 = vst [vmem:[%s4 + $0x2c] sm:$0xf] %v480
      %497 = vst [vmem:[%s4 + $0x30] sm:$0xf] %v481
      %498 = vst [vmem:[%s4 + $0x34] sm:$0xf] %v482
      %499 = vst [vmem:[%s4 + $0x38] sm:$0xf] %v483
      %500 = vst [vmem:[%s4 + $0x3c] sm:$0xf] %v484
    $region37: #{gcn_forward.3} parent=1 // pred_fallthru
      _
    // Predicated region
    $region38: #{gcn_forward.3} parent=1 // pred_check
      _
    $region39: #{gcn_forward.3} parent=1 // pred_check_branch
      %502 = sbr.rel (0) target = $region41
    $region40: #{gcn_forward.3} parent=1 // pred_region
      _
    $region41: #{gcn_forward.3} parent=1 // pred_fallthru
      _
    // Predicated region
    $region42: #{gcn_forward.3} parent=1 // pred_check
      _
    $region43: #{gcn_forward.3} parent=1 // pred_check_branch
      %504 = sbr.rel (0) target = $region45
    $region44: #{gcn_forward.3} parent=1 // pred_region
      _
    $region45: #{gcn_forward.3} parent=1 // pred_fallthru
      _
    %505 = vsyncpa [#allocation4], 1
    %506 = vsyncpa [#allocation6], 1

// kernel: gcn_forward.4
$region0: #{gcn_forward.4}
  #allocation0 [shape = 'u32[]', space=smem, size = 0x4, offset = 0x4, fixed_abs, tag = 'smem constant byte address 0x4 - core index']
  #allocation1 [shape = 'u32[72,128]{1,0:T(1,128)}', space=vmem, size = 0x9000, scoped, tag = 'internal scratch']
  #allocation2 [shape = 'f32[128,128]{1,0:T(8,128)}', space=vmem, size = 0x10000, scoped, tag = 'scratch operand']
  %s0 = inlined_call_operand.vmem [shape: bf16[128,128], index: 0, kind: input, shape index: {}]
  %s1 = inlined_call_operand.vmem [shape: bf16[128,128], index: 1, kind: input, shape index: {}]
  %s2 = inlined_call_operand.vmem [shape: bf16[128,128], index: 2, kind: input, shape index: {}]
  %s3 = inlined_call_operand.vmem [shape: f32[1,128], index: 3, kind: input, shape index: {}]
  %s4 = inlined_call_operand.vmem [shape: bf16[128,128], index: 4, kind: output, shape index: {}]
  %s5 = sld [smem:[#allocation0]]
  $region34: #{gcn_forward.4} parent=0
    _
  %s7 = ssub.s32 1, %s5
  %s8 = scalar_select 0, %s7, %s5
  // Predicated region
  $region2: #{gcn_forward.4} parent=0 // pred_check
    _
  $region3: #{gcn_forward.4} parent=0 // pred_check_branch
    %10 = sbr.rel (0) target = $region5
  $region4: #{gcn_forward.4} parent=0 // pred_region
    _
  $region5: #{gcn_forward.4} parent=0 // pred_fallthru
    _
  // Predicated region
  $region6: #{gcn_forward.4} parent=0 // pred_check
    _
  $region7: #{gcn_forward.4} parent=0 // pred_check_branch
    %12 = sbr.rel (0) target = $region9
  $region8: #{gcn_forward.4} parent=0 // pred_region
    _
  $region9: #{gcn_forward.4} parent=0 // pred_fallthru
    _
  // Predicated region
  $region10: #{gcn_forward.4} parent=0 // pred_check
    _
  $region11: #{gcn_forward.4} parent=0 // pred_check_branch
    %14 = sbr.rel (0) target = $region13
  $region12: #{gcn_forward.4} parent=0 // pred_region
    _
  $region13: #{gcn_forward.4} parent=0 // pred_fallthru
    _
  // Predicated region
  $region14: #{gcn_forward.4} parent=0 // pred_check
    _
  $region15: #{gcn_forward.4} parent=0 // pred_check_branch
    %16 = sbr.rel (0) target = $region17
  $region16: #{gcn_forward.4} parent=0 // pred_region
    _
  $region17: #{gcn_forward.4} parent=0 // pred_fallthru
    _
  %p17 = scmp.eq.s32.totalorder 0, 0
  // Predicated region
  $region18: #{gcn_forward.4} parent=0 // pred_check
    %p18 = pneg %p17
  $region19: #{gcn_forward.4} parent=0 // pred_check_branch
    %20 = sbr.rel (%p18) target = $region21
  $region20: #{gcn_forward.4} parent=0 // pred_region
    %21 = vst [vmem:[#allocation2] sm:$0xff] 0.0
    %22 = vst [vmem:[#allocation2 + $0x8] sm:$0xff] 0.0
    %23 = vst [vmem:[#allocation2 + $0x10] sm:$0xff] 0.0
    %24 = vst [vmem:[#allocation2 + $0x18] sm:$0xff] 0.0
    %25 = vst [vmem:[#allocation2 + $0x20] sm:$0xff] 0.0
    %26 = vst [vmem:[#allocation2 + $0x28] sm:$0xff] 0.0
    %27 = vst [vmem:[#allocation2 + $0x30] sm:$0xff] 0.0
    %28 = vst [vmem:[#allocation2 + $0x38] sm:$0xff] 0.0
    %29 = vst [vmem:[#allocation2 + $0x40] sm:$0xff] 0.0
    %30 = vst [vmem:[#allocation2 + $0x48] sm:$0xff] 0.0
    %31 = vst [vmem:[#allocation2 + $0x50] sm:$0xff] 0.0
    %32 = vst [vmem:[#allocation2 + $0x58] sm:$0xff] 0.0
    %33 = vst [vmem:[#allocation2 + $0x60] sm:$0xff] 0.0
    %34 = vst [vmem:[#allocation2 + $0x68] sm:$0xff] 0.0
    %35 = vst [vmem:[#allocation2 + $0x70] sm:$0xff] 0.0
    %36 = vst [vmem:[#allocation2 + $0x78] sm:$0xff] 0.0
  $region21: #{gcn_forward.4} parent=0 // pred_fallthru
    _
  %v37 = vld [vmem:[#allocation2] sm:$0xff]
  %v38 = vld [vmem:[#allocation2 + $0x8] sm:$0xff]
  %v39 = vld [vmem:[#allocation2 + $0x10] sm:$0xff]
  %v40 = vld [vmem:[#allocation2 + $0x18] sm:$0xff]
  %v41 = vld [vmem:[#allocation2 + $0x20] sm:$0xff]
  %v42 = vld [vmem:[#allocation2 + $0x28] sm:$0xff]
  %v43 = vld [vmem:[#allocation2 + $0x30] sm:$0xff]
  %v44 = vld [vmem:[#allocation2 + $0x38] sm:$0xff]
  %v45 = vld [vmem:[#allocation2 + $0x40] sm:$0xff]
  %v46 = vld [vmem:[#allocation2 + $0x48] sm:$0xff]
  %v47 = vld [vmem:[#allocation2 + $0x50] sm:$0xff]
  %v48 = vld [vmem:[#allocation2 + $0x58] sm:$0xff]
  %v49 = vld [vmem:[#allocation2 + $0x60] sm:$0xff]
  %v50 = vld [vmem:[#allocation2 + $0x68] sm:$0xff]
  %v51 = vld [vmem:[#allocation2 + $0x70] sm:$0xff]
  %v52 = vld [vmem:[#allocation2 + $0x78] sm:$0xff]
  %v53 = vld [vmem:[%s0] sm:$0xf]
  %v54 = vld [vmem:[%s0 + $0x4] sm:$0xf]
  %v55 = vld [vmem:[%s0 + $0x8] sm:$0xf]
  %v56 = vld [vmem:[%s0 + $0xc] sm:$0xf]
  %v57 = vld [vmem:[%s0 + $0x10] sm:$0xf]
  %v58 = vld [vmem:[%s0 + $0x14] sm:$0xf]
  %v59 = vld [vmem:[%s0 + $0x18] sm:$0xf]
  %v60 = vld [vmem:[%s0 + $0x1c] sm:$0xf]
  %v61 = vld [vmem:[%s0 + $0x20] sm:$0xf]
  %v62 = vld [vmem:[%s0 + $0x24] sm:$0xf]
  %v63 = vld [vmem:[%s0 + $0x28] sm:$0xf]
  %v64 = vld [vmem:[%s0 + $0x2c] sm:$0xf]
  %v65 = vld [vmem:[%s0 + $0x30] sm:$0xf]
  %v66 = vld [vmem:[%s0 + $0x34] sm:$0xf]
  %v67 = vld [vmem:[%s0 + $0x38] sm:$0xf]
  %v68 = vld [vmem:[%s0 + $0x3c] sm:$0xf]
  %v69 = vld [vmem:[%s1] sm:$0xf]
  %v70 = vld [vmem:[%s1 + $0x4] sm:$0xf]
  %v71 = vld [vmem:[%s1 + $0x8] sm:$0xf]
  %v72 = vld [vmem:[%s1 + $0xc] sm:$0xf]
  %v73 = vld [vmem:[%s1 + $0x10] sm:$0xf]
  %v74 = vld [vmem:[%s1 + $0x14] sm:$0xf]
  %v75 = vld [vmem:[%s1 + $0x18] sm:$0xf]
  %v76 = vld [vmem:[%s1 + $0x1c] sm:$0xf]
  %v77 = vld [vmem:[%s1 + $0x20] sm:$0xf]
  %v78 = vld [vmem:[%s1 + $0x24] sm:$0xf]
  %v79 = vld [vmem:[%s1 + $0x28] sm:$0xf]
  %v80 = vld [vmem:[%s1 + $0x2c] sm:$0xf]
  %v81 = vld [vmem:[%s1 + $0x30] sm:$0xf]
  %v82 = vld [vmem:[%s1 + $0x34] sm:$0xf]
  %v83 = vld [vmem:[%s1 + $0x38] sm:$0xf]
  %v84 = vld [vmem:[%s1 + $0x3c] sm:$0xf]
  %v101 = vunpack.c.l.b16 %v53
  %v102 = vunpack.c.l.b16 %v54
  %v103 = vunpack.c.l.b16 %v55
  %v104 = vunpack.c.l.b16 %v56
  %v105 = vunpack.c.l.b16 %v57
  %v106 = vunpack.c.l.b16 %v58
  %v107 = vunpack.c.l.b16 %v59
  %v108 = vunpack.c.l.b16 %v60
  %v109 = vunpack.c.l.b16 %v61
  %v110 = vunpack.c.l.b16 %v62
  %v111 = vunpack.c.l.b16 %v63
  %v112 = vunpack.c.l.b16 %v64
  %v113 = vunpack.c.l.b16 %v65
  %v114 = vunpack.c.l.b16 %v66
  %v115 = vunpack.c.l.b16 %v67
  %v116 = vunpack.c.l.b16 %v68
  %v117 = vpack.c.b16 %v102, %v101
  %v118 = vpack.c.b16 %v104, %v103
  %v119 = vpack.c.b16 %v106, %v105
  %v120 = vpack.c.b16 %v108, %v107
  %v121 = vpack.c.b16 %v110, %v109
  %v122 = vpack.c.b16 %v112, %v111
  %v123 = vpack.c.b16 %v114, %v113
  %v124 = vpack.c.b16 %v116, %v115
  %v149 = vunpack.c.l.b16 %v69
  %v150 = vunpack.c.l.b16 %v70
  %v151 = vunpack.c.l.b16 %v71
  %v152 = vunpack.c.l.b16 %v72
  %v153 = vunpack.c.l.b16 %v73
  %v154 = vunpack.c.l.b16 %v74
  %v155 = vunpack.c.l.b16 %v75
  %v156 = vunpack.c.l.b16 %v76
  %v157 = vunpack.c.l.b16 %v77
  %v158 = vunpack.c.l.b16 %v78
  %v159 = vunpack.c.l.b16 %v79
  %v160 = vunpack.c.l.b16 %v80
  %v161 = vunpack.c.l.b16 %v81
  %v162 = vunpack.c.l.b16 %v82
  %v163 = vunpack.c.l.b16 %v83
  %v164 = vunpack.c.l.b16 %v84
  %v165 = vpack.c.b16 %v150, %v149
  %v166 = vpack.c.b16 %v152, %v151
  %v167 = vpack.c.b16 %v154, %v153
  %v168 = vpack.c.b16 %v156, %v155
  %v169 = vpack.c.b16 %v158, %v157
  %v170 = vpack.c.b16 %v160, %v159
  %v171 = vpack.c.b16 %v162, %v161
  %v172 = vpack.c.b16 %v164, %v163
  %181 = vmatpush.bf16.msra.mxu0 %v172
  %182 = vmatpush.bf16.msra.mxu0 %v171
  %183 = vmatpush.bf16.msra.mxu0 %v170
  %184 = vmatpush.bf16.msra.mxu0 %v169
  %185 = vmatpush.bf16.msra.mxu0 %v168
  %186 = vmatpush.bf16.msra.mxu0 %v167
  %187 = vmatpush.bf16.msra.mxu0 %v166
  %188 = vmatpush.bf16.msra.mxu0 %v165
  %189 = vmatmul.bf16.gmra.mxu0 %v117
  %v190 = vpop.f32.mrf.mxu0
  %v191 = vadd.f32 0.0, %v190
  %v192 = vpop.f32.mrf.mxu0
  %v193 = vadd.f32 0.0, %v192
  %194 = vmatmul.bf16.gmra.mxu0 %v118
  %v195 = vpop.f32.mrf.mxu0
  %v196 = vadd.f32 0.0, %v195
  %v197 = vpop.f32.mrf.mxu0
  %v198 = vadd.f32 0.0, %v197
  %199 = vmatmul.bf16.gmra.mxu0 %v119
  %v200 = vpop.f32.mrf.mxu0
  %v201 = vadd.f32 0.0, %v200
  %v202 = vpop.f32.mrf.mxu0
  %v203 = vadd.f32 0.0, %v202
  %204 = vmatmul.bf16.gmra.mxu0 %v120
  %v205 = vpop.f32.mrf.mxu0
  %v206 = vadd.f32 0.0, %v205
  %v207 = vpop.f32.mrf.mxu0
  %v208 = vadd.f32 0.0, %v207
  %209 = vmatmul.bf16.gmra.mxu0 %v121
  %v210 = vpop.f32.mrf.mxu0
  %v211 = vadd.f32 0.0, %v210
  %v212 = vpop.f32.mrf.mxu0
  %v213 = vadd.f32 0.0, %v212
  %214 = vmatmul.bf16.gmra.mxu0 %v122
  %v215 = vpop.f32.mrf.mxu0
  %v216 = vadd.f32 0.0, %v215
  %v217 = vpop.f32.mrf.mxu0
  %v218 = vadd.f32 0.0, %v217
  %219 = vmatmul.bf16.gmra.mxu0 %v123
  %v220 = vpop.f32.mrf.mxu0
  %v221 = vadd.f32 0.0, %v220
  %v222 = vpop.f32.mrf.mxu0
  %v223 = vadd.f32 0.0, %v222
  %224 = vmatmul.bf16.gmra.mxu0 %v124
  %v225 = vpop.f32.mrf.mxu0
  %v226 = vadd.f32 0.0, %v225
  %v227 = vpop.f32.mrf.mxu0
  %v228 = vadd.f32 0.0, %v227
  %229 = vdwg.mxu0
  %v230 = vadd.f32 %v37, %v191
  %v231 = vadd.f32 %v38, %v193
  %v232 = vadd.f32 %v39, %v196
  %v233 = vadd.f32 %v40, %v198
  %v234 = vadd.f32 %v41, %v201
  %v235 = vadd.f32 %v42, %v203
  %v236 = vadd.f32 %v43, %v206
  %v237 = vadd.f32 %v44, %v208
  %v238 = vadd.f32 %v45, %v211
  %v239 = vadd.f32 %v46, %v213
  %v240 = vadd.f32 %v47, %v216
  %v241 = vadd.f32 %v48, %v218
  %v242 = vadd.f32 %v49, %v221
  %v243 = vadd.f32 %v50, %v223
  %v244 = vadd.f32 %v51, %v226
  %v245 = vadd.f32 %v52, %v228
  %246 = vst [vmem:[#allocation2] sm:$0xff] %v230
  %247 = vst [vmem:[#allocation2 + $0x8] sm:$0xff] %v231
  %248 = vst [vmem:[#allocation2 + $0x10] sm:$0xff] %v232
  %249 = vst [vmem:[#allocation2 + $0x18] sm:$0xff] %v233
  %250 = vst [vmem:[#allocation2 + $0x20] sm:$0xff] %v234
  %251 = vst [vmem:[#allocation2 + $0x28] sm:$0xff] %v235
  %252 = vst [vmem:[#allocation2 + $0x30] sm:$0xff] %v236
  %253 = vst [vmem:[#allocation2 + $0x38] sm:$0xff] %v237
  %254 = vst [vmem:[#allocation2 + $0x40] sm:$0xff] %v238
  %255 = vst [vmem:[#allocation2 + $0x48] sm:$0xff] %v239
  %256 = vst [vmem:[#allocation2 + $0x50] sm:$0xff] %v240
  %257 = vst [vmem:[#allocation2 + $0x58] sm:$0xff] %v241
  %258 = vst [vmem:[#allocation2 + $0x60] sm:$0xff] %v242
  %259 = vst [vmem:[#allocation2 + $0x68] sm:$0xff] %v243
  %260 = vst [vmem:[#allocation2 + $0x70] sm:$0xff] %v244
  %261 = vst [vmem:[#allocation2 + $0x78] sm:$0xff] %v245
  // Predicated region
  $region22: #{gcn_forward.4} parent=0 // pred_check
    %p262 = pneg %p17
  $region23: #{gcn_forward.4} parent=0 // pred_check_branch
    %264 = sbr.rel (%p262) target = $region25
  $region24: #{gcn_forward.4} parent=0 // pred_region
    %v265 = vld [vmem:[#allocation2] sm:$0xff]
    %v266 = vld [vmem:[#allocation2 + $0x8] sm:$0xff]
    %v267 = vld [vmem:[#allocation2 + $0x10] sm:$0xff]
    %v268 = vld [vmem:[#allocation2 + $0x18] sm:$0xff]
    %v269 = vld [vmem:[#allocation2 + $0x20] sm:$0xff]
    %v270 = vld [vmem:[#allocation2 + $0x28] sm:$0xff]
    %v271 = vld [vmem:[#allocation2 + $0x30] sm:$0xff]
    %v272 = vld [vmem:[#allocation2 + $0x38] sm:$0xff]
    %v273 = vld [vmem:[#allocation2 + $0x40] sm:$0xff]
    %v274 = vld [vmem:[#allocation2 + $0x48] sm:$0xff]
    %v275 = vld [vmem:[#allocation2 + $0x50] sm:$0xff]
    %v276 = vld [vmem:[#allocation2 + $0x58] sm:$0xff]
    %v277 = vld [vmem:[#allocation2 + $0x60] sm:$0xff]
    %v278 = vld [vmem:[#allocation2 + $0x68] sm:$0xff]
    %v279 = vld [vmem:[#allocation2 + $0x70] sm:$0xff]
    %v280 = vld [vmem:[#allocation2 + $0x78] sm:$0xff]
    %v281 = vpack.c.bf16 %v266, %v265
    %v282 = vpack.c.bf16 %v268, %v267
    %v283 = vpack.c.bf16 %v270, %v269
    %v284 = vpack.c.bf16 %v272, %v271
    %v285 = vpack.c.bf16 %v274, %v273
    %v286 = vpack.c.bf16 %v276, %v275
    %v287 = vpack.c.bf16 %v278, %v277
    %v288 = vpack.c.bf16 %v280, %v279
    %v289 = vld [vmem:[%s2] sm:$0xf]
    %v290 = vld [vmem:[%s2 + $0x4] sm:$0xf]
    %v291 = vld [vmem:[%s2 + $0x8] sm:$0xf]
    %v292 = vld [vmem:[%s2 + $0xc] sm:$0xf]
    %v293 = vld [vmem:[%s2 + $0x10] sm:$0xf]
    %v294 = vld [vmem:[%s2 + $0x14] sm:$0xf]
    %v295 = vld [vmem:[%s2 + $0x18] sm:$0xf]
    %v296 = vld [vmem:[%s2 + $0x1c] sm:$0xf]
    %v297 = vld [vmem:[%s2 + $0x20] sm:$0xf]
    %v298 = vld [vmem:[%s2 + $0x24] sm:$0xf]
    %v299 = vld [vmem:[%s2 + $0x28] sm:$0xf]
    %v300 = vld [vmem:[%s2 + $0x2c] sm:$0xf]
    %v301 = vld [vmem:[%s2 + $0x30] sm:$0xf]
    %v302 = vld [vmem:[%s2 + $0x34] sm:$0xf]
    %v303 = vld [vmem:[%s2 + $0x38] sm:$0xf]
    %v304 = vld [vmem:[%s2 + $0x3c] sm:$0xf]
    %v305 = vld [vmem:[%s3] sm:$0x1]
    %v307 = vperm.slane %v305, 0
    %v325 = vunpack.c.l.b16 %v289
    %v326 = vunpack.c.l.b16 %v290
    %v327 = vunpack.c.l.b16 %v291
    %v328 = vunpack.c.l.b16 %v292
    %v329 = vunpack.c.l.b16 %v293
    %v330 = vunpack.c.l.b16 %v294
    %v331 = vunpack.c.l.b16 %v295
    %v332 = vunpack.c.l.b16 %v296
    %v333 = vunpack.c.l.b16 %v297
    %v334 = vunpack.c.l.b16 %v298
    %v335 = vunpack.c.l.b16 %v299
    %v336 = vunpack.c.l.b16 %v300
    %v337 = vunpack.c.l.b16 %v301
    %v338 = vunpack.c.l.b16 %v302
    %v339 = vunpack.c.l.b16 %v303
    %v340 = vunpack.c.l.b16 %v304
    %v341 = vpack.c.b16 %v326, %v325
    %v342 = vpack.c.b16 %v328, %v327
    %v343 = vpack.c.b16 %v330, %v329
    %v344 = vpack.c.b16 %v332, %v331
    %v345 = vpack.c.b16 %v334, %v333
    %v346 = vpack.c.b16 %v336, %v335
    %v347 = vpack.c.b16 %v338, %v337
    %v348 = vpack.c.b16 %v340, %v339
    %357 = vmatpush.bf16.msra.mxu0 %v348
    %358 = vmatpush.bf16.msra.mxu0 %v347
    %359 = vmatpush.bf16.msra.mxu0 %v346
    %360 = vmatpush.bf16.msra.mxu0 %v345
    %361 = vmatpush.bf16.msra.mxu0 %v344
    %362 = vmatpush.bf16.msra.mxu0 %v343
    %363 = vmatpush.bf16.msra.mxu0 %v342
    %364 = vmatpush.bf16.msra.mxu0 %v341
    %365 = vmatmul.bf16.gmra.mxu0 %v281
    %v366 = vpop.f32.mrf.mxu0
    %v367 = vadd.f32 %v307, %v366
    %v368 = vpop.f32.mrf.mxu0
    %v369 = vadd.f32 %v307, %v368
    %370 = vmatmul.bf16.gmra.mxu0 %v282
    %v371 = vpop.f32.mrf.mxu0
    %v372 = vadd.f32 %v307, %v371
    %v373 = vpop.f32.mrf.mxu0
    %v374 = vadd.f32 %v307, %v373
    %375 = vmatmul.bf16.gmra.mxu0 %v283
    %v376 = vpop.f32.mrf.mxu0
    %v377 = vadd.f32 %v307, %v376
    %v378 = vpop.f32.mrf.mxu0
    %v379 = vadd.f32 %v307, %v378
    %380 = vmatmul.bf16.gmra.mxu0 %v284
    %v381 = vpop.f32.mrf.mxu0
    %v382 = vadd.f32 %v307, %v381
    %v383 = vpop.f32.mrf.mxu0
    %v384 = vadd.f32 %v307, %v383
    %385 = vmatmul.bf16.gmra.mxu0 %v285
    %v386 = vpop.f32.mrf.mxu0
    %v387 = vadd.f32 %v307, %v386
    %v388 = vpop.f32.mrf.mxu0
    %v389 = vadd.f32 %v307, %v388
    %390 = vmatmul.bf16.gmra.mxu0 %v286
    %v391 = vpop.f32.mrf.mxu0
    %v392 = vadd.f32 %v307, %v391
    %v393 = vpop.f32.mrf.mxu0
    %v394 = vadd.f32 %v307, %v393
    %395 = vmatmul.bf16.gmra.mxu0 %v287
    %v396 = vpop.f32.mrf.mxu0
    %v397 = vadd.f32 %v307, %v396
    %v398 = vpop.f32.mrf.mxu0
    %v399 = vadd.f32 %v307, %v398
    %400 = vmatmul.bf16.gmra.mxu0 %v288
    %v401 = vpop.f32.mrf.mxu0
    %v402 = vadd.f32 %v307, %v401
    %v403 = vpop.f32.mrf.mxu0
    %v404 = vadd.f32 %v307, %v403
    %405 = vdwg.mxu0
    %v406 = vmax.f32 %v367, 0.0
    %v407 = vmax.f32 %v369, 0.0
    %v408 = vmax.f32 %v372, 0.0
    %v409 = vmax.f32 %v374, 0.0
    %v410 = vmax.f32 %v377, 0.0
    %v411 = vmax.f32 %v379, 0.0
    %v412 = vmax.f32 %v382, 0.0
    %v413 = vmax.f32 %v384, 0.0
    %v414 = vmax.f32 %v387, 0.0
    %v415 = vmax.f32 %v389, 0.0
    %v416 = vmax.f32 %v392, 0.0
    %v417 = vmax.f32 %v394, 0.0
    %v418 = vmax.f32 %v397, 0.0
    %v419 = vmax.f32 %v399, 0.0
    %v420 = vmax.f32 %v402, 0.0
    %v421 = vmax.f32 %v404, 0.0
    %v422 = vpack.c.bf16 %v406, %v406
    %v423 = vpack.c.bf16 %v407, %v407
    %v424 = vpack.c.bf16 %v408, %v408
    %v425 = vpack.c.bf16 %v409, %v409
    %v426 = vpack.c.bf16 %v410, %v410
    %v427 = vpack.c.bf16 %v411, %v411
    %v428 = vpack.c.bf16 %v412, %v412
    %v429 = vpack.c.bf16 %v413, %v413
    %v430 = vpack.c.bf16 %v414, %v414
    %v431 = vpack.c.bf16 %v415, %v415
    %v432 = vpack.c.bf16 %v416, %v416
    %v433 = vpack.c.bf16 %v417, %v417
    %v434 = vpack.c.bf16 %v418, %v418
    %v435 = vpack.c.bf16 %v419, %v419
    %v436 = vpack.c.bf16 %v420, %v420
    %v437 = vpack.c.bf16 %v421, %v421
    %438 = vst [vmem:[%s4] sm:$0xf] %v422
    %439 = vst [vmem:[%s4 + $0x4] sm:$0xf] %v423
    %440 = vst [vmem:[%s4 + $0x8] sm:$0xf] %v424
    %441 = vst [vmem:[%s4 + $0xc] sm:$0xf] %v425
    %442 = vst [vmem:[%s4 + $0x10] sm:$0xf] %v426
    %443 = vst [vmem:[%s4 + $0x14] sm:$0xf] %v427
    %444 = vst [vmem:[%s4 + $0x18] sm:$0xf] %v428
    %445 = vst [vmem:[%s4 + $0x1c] sm:$0xf] %v429
    %446 = vst [vmem:[%s4 + $0x20] sm:$0xf] %v430
    %447 = vst [vmem:[%s4 + $0x24] sm:$0xf] %v431
    %448 = vst [vmem:[%s4 + $0x28] sm:$0xf] %v432
    %449 = vst [vmem:[%s4 + $0x2c] sm:$0xf] %v433
    %450 = vst [vmem:[%s4 + $0x30] sm:$0xf] %v434
    %451 = vst [vmem:[%s4 + $0x34] sm:$0xf] %v435
    %452 = vst [vmem:[%s4 + $0x38] sm:$0xf] %v436
    %453 = vst [vmem:[%s4 + $0x3c] sm:$0xf] %v437
  $region25: #{gcn_forward.4} parent=0 // pred_fallthru
    _
  // Predicated region
  $region26: #{gcn_forward.4} parent=0 // pred_check
    _
  $region27: #{gcn_forward.4} parent=0 // pred_check_branch
    %455 = sbr.rel (0) target = $region29
  $region28: #{gcn_forward.4} parent=0 // pred_region
    _
  $region29: #{gcn_forward.4} parent=0 // pred_fallthru
    _
  // Predicated region
  $region30: #{gcn_forward.4} parent=0 // pred_check
    _
  $region31: #{gcn_forward.4} parent=0 // pred_check_branch
    %457 = sbr.rel (0) target = $region33
  $region32: #{gcn_forward.4} parent=0 // pred_region
    _
  $region33: #{gcn_forward.4} parent=0 // pred_fallthru
    _

</llo_original>
